<compile_context>
chip_gen: v7x
topology: tpu7x:2x2x1
jax: 0.10.0
libtpu: 0.0.40
codegen_flags: <defaults>
</compile_context>

<pallas_src>
import functools

import jax
import jax.numpy as jnp
import numpy as np
from jax import lax
from jax.experimental import pallas as pl
from jax.experimental.pallas import tpu as pltpu

_OUT_W = 128       # width of the packed lane-dense output slab
_IDX_LANE0 = 64    # float-encoded expert indices live in lanes [64, 64+top_k)


def _round_up(x, m):
    return ((x + m - 1) // m) * m


def prepare_router_weight(weight):
    """(n_experts, hidden) module weight -> (hidden, n_experts) bf16.

    Do this once at load time: the bf16 cast and the transpose are amortized
    over every router call, and the (H, E) orientation keeps the in-kernel
    contraction in the MXU-native A @ B form (no per-step weight relayouts).
    """
    return jnp.asarray(weight, jnp.bfloat16).T


def _group_allmax(x, col, group_size):
    """Broadcast each group's max to all of that group's lanes.

    XOR butterfly of lane rolls: log2(group_size) rounds of 2 XLU rolls plus a
    VPU select/max.  Groups are contiguous `group_size` (power of two) lanes.
    """
    E = x.shape[-1]
    s = 1
    while s < group_size:
        up = pltpu.roll(x, shift=E - s, axis=1)   # lane i sees lane i + s
        dn = pltpu.roll(x, shift=s, axis=1)       # lane i sees lane i - s
        x = jnp.maximum(x, jnp.where((col & s) == 0, up, dn))
        s *= 2
    return x


def _router_kernel(x_ref, w_ref, bias_ref, out_ref, scores_ref, *,
                   n_group, topk_group, top_k, routed_scaling_factor,
                   norm_topk_prob, sub_rows, use_butterfly):
    neg = jnp.float32(-1e30)
    tm = x_ref.shape[0]
    E = w_ref.shape[1]
    group_size = E // n_group

    # ---- router logits on the MXU: (tm, H)bf16 @ (H, E)bf16 -> f32 ---------
    x = x_ref[...]
    if x.dtype != jnp.bfloat16:
        x = x.astype(jnp.bfloat16)            # in-VMEM cast, no extra HBM pass
    logits = jnp.dot(x, w_ref[...], preferred_element_type=jnp.float32)
    scores_ref[...] = jax.nn.sigmoid(logits)  # park sigmoid scores in scratch

    bias = bias_ref[...]                                   # (1, E) f32
    col = lax.broadcasted_iota(jnp.int32, (1, E), 1)       # lane index (1, E)
    ocol = lax.broadcasted_iota(jnp.int32, (1, _OUT_W), 1)

    # ---- selection phase over small row sub-chunks (bounds vreg pressure) --
    def select(j, carry):
        r0 = pl.multiple_of(j * sub_rows, sub_rows)
        scores = scores_ref[pl.ds(r0, sub_rows), :]        # (sub, E) f32
        sfc = scores + bias                                # scores_for_choice

        # per-group sum of the top-2 scores, broadcast to every expert lane
        if use_butterfly:
            m1 = _group_allmax(sfc, col, group_size)
            m2 = _group_allmax(jnp.where(sfc == m1, neg, sfc), col, group_size)
            gs = m1 + m2
        else:
            gs = jnp.zeros_like(sfc)
            for g in range(n_group):
                in_g = (col >= g * group_size) & (col < (g + 1) * group_size)
                vg = jnp.where(in_g, sfc, neg)
                m1 = jnp.max(vg, axis=-1, keepdims=True)
                m2 = jnp.max(jnp.where(vg == m1, neg, vg), axis=-1,
                             keepdims=True)
                gs = jnp.where(in_g, m1 + m2, gs)

        # keep topk_group groups.  gs is lane-constant within each group, so
        # the winner mask is a plain equality (no argmin reduction); exact
        # inter-group score ties (prob ~0) may keep extra groups.
        cur = jnp.zeros_like(sfc)           # torch masked_fill(~mask, 0.0)
        for _ in range(topk_group):
            m = jnp.max(gs, axis=-1, keepdims=True)
            win = gs == m
            cur = jnp.where(win, sfc, cur)
            gs = jnp.where(win, neg, gs)

        # top_k experts; lowest-index tie-break keeps indices unique
        w_cols, i_cols = [], []
        for _ in range(top_k):
            m = jnp.max(cur, axis=-1, keepdims=True)
            sel = jnp.min(jnp.where(cur == m, col, E), axis=-1, keepdims=True)
            hit = col == sel
            # routing weight is gathered from the *unbiased* sigmoid scores
            w_cols.append(jnp.sum(jnp.where(hit, scores, 0.0), axis=-1,
                                  keepdims=True))
            i_cols.append(sel.astype(jnp.float32))   # exact for E < 2**24
            cur = jnp.where(hit, neg, cur)

        if norm_topk_prob:
            inv = 1.0 / (sum(w_cols) + jnp.float32(1e-20))
            w_cols = [w * inv for w in w_cols]
        scale = jnp.float32(routed_scaling_factor)
        w_cols = [w * scale for w in w_cols]

        # pack both outputs into ONE lane-dense f32 slab:
        #   lanes [0, top_k)            -> routing weights
        #   lanes [64, 64 + top_k)      -> float-encoded expert indices
        slab = jnp.zeros((sub_rows, _OUT_W), jnp.float32)
        for k in range(top_k):
            slab = jnp.where(ocol == k, w_cols[k], slab)
            slab = jnp.where(ocol == _IDX_LANE0 + k, i_cols[k], slab)
        out_ref[pl.ds(r0, sub_rows), :] = slab
        return carry

    lax.fori_loop(0, tm // sub_rows, select, 0)


def deepseek_v3_topk_router(hidden_states, weight, e_score_correction_bias, *,
                            top_k, n_group, topk_group, routed_scaling_factor,
                            norm_topk_prob, token_block=128):
    """Fused DeepseekV3 top-k router.

    hidden_states: (..., hidden), any float dtype (bf16 preferred).
    weight: preferably the (hidden, n_experts) bf16 array returned by
        prepare_router_weight(); the raw (n_experts, hidden) module weight is
        also accepted and converted on the fly.
    Returns (topk_indices int32 (T, top_k), topk_weights f32 (T, top_k)).
    """
    H = hidden_states.shape[-1]
    if weight.ndim != 2:
        raise ValueError("weight must be 2-D")
    if weight.shape[0] == H and weight.dtype == jnp.bfloat16:
        w = weight                            # already prepared (H, E) bf16
    else:
        w = prepare_router_weight(weight)     # one-time cast + transpose
    E = w.shape[1]
    assert E % n_group == 0
    assert 0 < top_k <= _IDX_LANE0

    x = hidden_states.reshape(-1, H)          # no pad / no cast: no extra HBM pass
    T = x.shape[0]

    # Token block: large enough to fill the MXU, but guarantee >= 2 grid steps
    # when possible so both v7x TensorCores get work.  The ragged last block
    # computes garbage rows whose writeback is masked (rows are independent;
    # no cross-row reductions exist in the kernel).
    tb = min(token_block, _round_up(T, 8))
    if T > 8 and pl.cdiv(T, tb) < 2:
        tb = _round_up(pl.cdiv(T, 2), 8)
    if tb >= 32:
        tb = _round_up(tb, 32)
    sub = 32 if tb % 32 == 0 else (16 if tb % 16 == 0 else 8)
    assert tb % sub == 0

    bias = e_score_correction_bias.reshape(1, E).astype(jnp.float32)
    group_size = E // n_group
    use_butterfly = (group_size > 1 and group_size & (group_size - 1) == 0
                     and E % 128 == 0)

    kernel = functools.partial(
        _router_kernel, n_group=n_group, topk_group=topk_group, top_k=top_k,
        routed_scaling_factor=routed_scaling_factor,
        norm_topk_prob=norm_topk_prob, sub_rows=sub,
        use_butterfly=use_butterfly)

    def run(single_buffer_resident):
        def resident(shape):
            if single_buffer_resident:
                # constant index_map => double buffering buys nothing; halve
                # the resident weight's VMEM footprint (matters on v7x 64 MiB)
                return pl.BlockSpec(shape, lambda i: (0, 0),
                                    pipeline_mode=pl.Buffered(1))
            return pl.BlockSpec(shape, lambda i: (0, 0))

        return pl.pallas_call(
            kernel,
            out_shape=jax.ShapeDtypeStruct((T, _OUT_W), jnp.float32),
            grid_spec=pltpu.PrefetchScalarGridSpec(
                num_scalar_prefetch=0,
                grid=(pl.cdiv(T, tb),),
                in_specs=[pl.BlockSpec((tb, H), lambda i: (i, 0)),
                          resident((H, E)),
                          resident((1, E))],
                out_specs=pl.BlockSpec((tb, _OUT_W), lambda i: (i, 0)),
                scratch_shapes=[pltpu.VMEM((tb, E), jnp.float32)]),
            compiler_params=pltpu.CompilerParams(
                dimension_semantics=("parallel",),
                vmem_limit_bytes=32 * 1024 * 1024),
        )(x, w, bias)

    try:
        out = run(True)
    except Exception:   # older jax without pipeline_mode / Buffered(1) support
        out = run(False)

    wts = out[:, :top_k]
    idx = out[:, _IDX_LANE0:_IDX_LANE0 + top_k].astype(jnp.int32)
    return idx, wts


# ----------------------------------------------------------------------------
# Reference + checks
# ----------------------------------------------------------------------------
def _reference(hidden_states, weight, bias, *, top_k, n_group, topk_group,
               routed_scaling_factor, norm_topk_prob):
    """Pure-JAX replica of the PyTorch forward (same bf16 matmul precision)."""
    E, H = weight.shape
    x = hidden_states.reshape(-1, H).astype(jnp.bfloat16)
    w_t = weight.astype(jnp.bfloat16).T
    logits = jnp.dot(x, w_t, preferred_element_type=jnp.float32)
    scores = jax.nn.sigmoid(logits)
    sfc = scores + bias[None, :].astype(jnp.float32)
    T = sfc.shape[0]
    gsize = E // n_group
    top2 = lax.top_k(sfc.reshape(T, n_group, gsize), 2)[0].sum(-1)
    gidx = lax.top_k(top2, topk_group)[1]
    gmask = jnp.zeros((T, n_group)).at[jnp.arange(T)[:, None], gidx].set(1.0)
    smask = jnp.repeat(gmask, gsize, axis=-1).astype(bool)
    sfc_m = jnp.where(smask, sfc, 0.0)
    tidx = lax.top_k(sfc_m, top_k)[1]
    tw = jnp.take_along_axis(scores, tidx, axis=-1)
    if norm_topk_prob:
        tw = tw / (tw.sum(-1, keepdims=True) + 1e-20)
    tw = tw * routed_scaling_factor
    return tidx, tw, scores


def _check_case(name, *, batch, seq, hidden, n_experts, n_group, topk_group,
                top_k, routed_scaling_factor, norm_topk_prob, bias_scale, seed):
    key = jax.random.PRNGKey(seed)
    k_x, k_w, k_b = jax.random.split(key, 3)
    hidden_states = jax.random.normal(k_x, (batch, seq, hidden), jnp.bfloat16)
    weight = jax.random.normal(k_w, (n_experts, hidden), jnp.float32) * 0.05
    if bias_scale:
        bias = jax.random.normal(k_b, (n_experts,), jnp.float32) * bias_scale
    else:
        bias = jnp.zeros((n_experts,), jnp.float32)

    # weight is prepared once, outside the router call (review item 1 / 3)
    w_prepped = prepare_router_weight(weight)
    idx, w = deepseek_v3_topk_router(
        hidden_states, w_prepped, bias, top_k=top_k, n_group=n_group,
        topk_group=topk_group, routed_scaling_factor=routed_scaling_factor,
        norm_topk_prob=norm_topk_prob)
    jax.block_until_ready((idx, w))

    ref_idx, ref_w, ref_scores = _reference(
        hidden_states, weight, bias, top_k=top_k, n_group=n_group,
        topk_group=topk_group, routed_scaling_factor=routed_scaling_factor,
        norm_topk_prob=norm_topk_prob)

    idx_np, w_np = np.asarray(idx), np.asarray(w)
    ref_idx_np, ref_w_np = np.asarray(ref_idx), np.asarray(ref_w)
    scores_np = np.asarray(ref_scores)
    T = batch * seq

    # Shapes / dtypes / basic routing invariants.
    assert idx_np.shape == (T, top_k) and idx_np.dtype == np.int32, name
    assert w_np.shape == (T, top_k) and w_np.dtype == np.float32, name
    assert ((idx_np >= 0) & (idx_np < n_experts)).all(), name
    assert all(len(set(row.tolist())) == top_k for row in idx_np), name
    if norm_topk_prob:
        np.testing.assert_allclose(
            w_np.sum(-1), np.full(T, routed_scaling_factor, np.float32),
            rtol=1e-4, err_msg=name)

    # Weights must equal the (normalized, scaled) sigmoid scores gathered at
    # the indices the kernel returned.
    gathered = np.take_along_axis(scores_np, idx_np, axis=1)
    if norm_topk_prob:
        gathered = gathered / (gathered.sum(-1, keepdims=True) + 1e-20)
    np.testing.assert_allclose(w_np, gathered * routed_scaling_factor,
                               rtol=5e-4, atol=1e-6, err_msg=name)

    # Indices should match the reference; tolerate rare near-tie swaps only.
    row_match = (idx_np == ref_idx_np).all(axis=1)
    assert row_match.mean() >= 0.95, (name, float(row_match.mean()))
    if not row_match.all():
        bad = ~row_match
        a = np.sort(np.take_along_axis(scores_np, idx_np[bad], 1), -1)
        b = np.sort(np.take_along_axis(scores_np, ref_idx_np[bad], 1), -1)
        np.testing.assert_allclose(a, b, atol=2e-3, rtol=0, err_msg=name)
    np.testing.assert_allclose(w_np[row_match], ref_w_np[row_match],
                               rtol=1e-3, atol=1e-5, err_msg=name)


if __name__ == "__main__":
    # Small config: per-group fallback reduction path (E=16 not lane-aligned),
    # 8-row blocks, 2-step grid.
    _check_case("small",
                batch=2, seq=8, hidden=32, n_experts=16, n_group=4,
                topk_group=2, top_k=4, routed_scaling_factor=2.5,
                norm_topk_prob=False, bias_scale=0.0, seed=0)

    # DeepSeek-V3-like config: butterfly group reduction (E=256, gsize=32),
    # 128-token blocks with 32-row selection sub-chunks, a ragged last block
    # (T=144), a 2-step "parallel" grid and a non-zero correction bias.
    _check_case("dsv3_like",
                batch=2, seq=72, hidden=512, n_experts=256, n_group=8,
                topk_group=4, top_k=8, routed_scaling_factor=2.5,
                norm_topk_prob=True, bias_scale=0.5, seed=0)

    print("KERNEL_OK")
</pallas_src>

<mosaic_0001>
module attributes {stable_mosaic.version = 11 : i64} {
  func.func @_router_kernel(%arg0: i32, %arg1: memref<8x32xbf16, #tpu.memory_space<vmem>>, %arg2: memref<32x16xbf16, #tpu.memory_space<vmem>>, %arg3: memref<1x16xf32, #tpu.memory_space<vmem>>, %arg4: memref<8x128xf32, #tpu.memory_space<vmem>>, %arg5: memref<8x16xf32, #tpu.memory_space<vmem>>) attributes {dimension_semantics = [#tpu.dimension_semantics<parallel>], iteration_bounds = array<i64: 2>, scalar_prefetch = 0 : i64, scratch_operands = 1 : i64, tpu.core_type = #tpu.core_type<tc>, window_params = [{transform_indices = @transform_0, window_bounds = array<i64: 8, 32>}, {pipeline_mode = #tpu.pipeline_mode<synchronous>, transform_indices = @transform_1, window_bounds = array<i64: 32, 16>}, {pipeline_mode = #tpu.pipeline_mode<synchronous>, transform_indices = @transform_2, window_bounds = array<i64: 1, 16>}, {transform_indices = @transform_3, window_bounds = array<i64: 8, 128>}]} {
    %c0 = arith.constant 0 : index
    %c0_0 = arith.constant 0 : index
    %0 = vector.load %arg1[%c0, %c0_0] : memref<8x32xbf16, #tpu.memory_space<vmem>>, vector<8x32xbf16>
    %c0_1 = arith.constant 0 : index
    %c0_2 = arith.constant 0 : index
    %1 = vector.load %arg2[%c0_1, %c0_2] : memref<32x16xbf16, #tpu.memory_space<vmem>>, vector<32x16xbf16>
    %cst = arith.constant dense<0.000000e+00> : vector<8x16xf32>
    %2 = tpu.matmul %0, %1, %cst {dimension_numbers = #tpu.dot_dimension_numbers<[1], [0], [0], [1], [0, 0, 1, 1], [], []>} : vector<8x32xbf16>, vector<32x16xbf16>, vector<8x16xf32> -> vector<8x16xf32>
    %3 = arith.negf %2 : vector<8x16xf32>
    %4 = math.exp %3 : vector<8x16xf32>
    %cst_3 = arith.constant 1.000000e+00 : f32
    %5 = vector.broadcast %cst_3 : f32 to vector<8x16xf32>
    %6 = arith.addf %5, %4 : vector<8x16xf32>
    %7 = arith.divf %5, %6 : vector<8x16xf32>
    %c0_4 = arith.constant 0 : index
    %c0_5 = arith.constant 0 : index
    %8 = vector.load %arg5[%c0_4, %c0_5] : memref<8x16xf32, #tpu.memory_space<vmem>>, vector<8x16xf32>
    tpu.vector_store %arg5[%c0_4, %c0_5], %7 {strides = array<i32>} : memref<8x16xf32, #tpu.memory_space<vmem>>, vector<8x16xf32>,
    %c0_6 = arith.constant 0 : index
    %c0_7 = arith.constant 0 : index
    %9 = vector.load %arg3[%c0_6, %c0_7] : memref<1x16xf32, #tpu.memory_space<vmem>>, vector<1x16xf32>
    %10 = tpu.iota {dimensions = array<i32: 1>} : vector<1x16xi32>
    %11 = tpu.iota {dimensions = array<i32: 1>} : vector<1x128xi32>
    %cst_8 = arith.constant -1.000000e+30 : f32
    %c0_i32 = arith.constant 0 : i32
    %c8_i32 = arith.constant 8 : i32
    %12 = arith.muli %c0_i32, %c8_i32 : i32
    %13 = tpu.assume_multiple %12, 8 : i32
    %14 = arith.index_cast %13 : i32 to index
    %c0_9 = arith.constant 0 : index
    %15 = vector.load %arg5[%14, %c0_9] : memref<8x16xf32, #tpu.memory_space<vmem>>, vector<8x16xf32>
    %16 = vector.broadcast %9 : vector<1x16xf32> to vector<8x16xf32>
    %17 = arith.addf %15, %16 : vector<8x16xf32>
    %cst_10 = arith.constant 0.000000e+00 : f32
    %18 = vector.broadcast %cst_10 : f32 to vector<8x16xf32>
    %c0_i32_11 = arith.constant 0 : i32
    %19 = vector.broadcast %c0_i32_11 : i32 to vector<1x16xi32>
    %20 = arith.cmpi sge, %10, %19 : vector<1x16xi32>
    %c4_i32 = arith.constant 4 : i32
    %21 = vector.broadcast %c4_i32 : i32 to vector<1x16xi32>
    %22 = arith.cmpi slt, %10, %21 : vector<1x16xi32>
    %23 = arith.andi %20, %22 : vector<1x16xi1>
    %24 = vector.shape_cast %23 : vector<1x16xi1> to vector<1x16xi1>
    %25 = vector.broadcast %24 : vector<1x16xi1> to vector<8x16xi1>
    %26 = vector.broadcast %cst_8 : f32 to vector<8x16xf32>
    %27 = arith.select %25, %17, %26 : vector<8x16xi1>, vector<8x16xf32>
    %cst_12 = arith.constant dense<0xFF800000> : vector<8xf32>
    %28 = vector.multi_reduction <maximumf>, %27, %cst_12 [1] : vector<8x16xf32> to vector<8xf32>
    %29 = vector.shape_cast %28 : vector<8xf32> to vector<8x1xf32>
    %30 = vector.broadcast %29 : vector<8x1xf32> to vector<8x16xf32>
    %31 = arith.cmpf oeq, %27, %30 : vector<8x16xf32>
    %32 = vector.broadcast %cst_8 : f32 to vector<8x16xf32>
    %33 = arith.select %31, %32, %27 : vector<8x16xi1>, vector<8x16xf32>
    %cst_13 = arith.constant dense<0xFF800000> : vector<8xf32>
    %34 = vector.multi_reduction <maximumf>, %33, %cst_13 [1] : vector<8x16xf32> to vector<8xf32>
    %35 = vector.shape_cast %34 : vector<8xf32> to vector<8x1xf32>
    %36 = arith.addf %29, %35 : vector<8x1xf32>
    %37 = vector.shape_cast %23 : vector<1x16xi1> to vector<1x16xi1>
    %38 = vector.broadcast %37 : vector<1x16xi1> to vector<8x16xi1>
    %39 = vector.shape_cast %36 : vector<8x1xf32> to vector<8x1xf32>
    %40 = vector.broadcast %39 : vector<8x1xf32> to vector<8x16xf32>
    %41 = arith.select %38, %40, %18 : vector<8x16xi1>, vector<8x16xf32>
    %c4_i32_14 = arith.constant 4 : i32
    %42 = vector.broadcast %c4_i32_14 : i32 to vector<1x16xi32>
    %43 = arith.cmpi sge, %10, %42 : vector<1x16xi32>
    %c8_i32_15 = arith.constant 8 : i32
    %44 = vector.broadcast %c8_i32_15 : i32 to vector<1x16xi32>
    %45 = arith.cmpi slt, %10, %44 : vector<1x16xi32>
    %46 = arith.andi %43, %45 : vector<1x16xi1>
    %47 = vector.shape_cast %46 : vector<1x16xi1> to vector<1x16xi1>
    %48 = vector.broadcast %47 : vector<1x16xi1> to vector<8x16xi1>
    %49 = vector.broadcast %cst_8 : f32 to vector<8x16xf32>
    %50 = arith.select %48, %17, %49 : vector<8x16xi1>, vector<8x16xf32>
    %cst_16 = arith.constant dense<0xFF800000> : vector<8xf32>
    %51 = vector.multi_reduction <maximumf>, %50, %cst_16 [1] : vector<8x16xf32> to vector<8xf32>
    %52 = vector.shape_cast %51 : vector<8xf32> to vector<8x1xf32>
    %53 = vector.broadcast %52 : vector<8x1xf32> to vector<8x16xf32>
    %54 = arith.cmpf oeq, %50, %53 : vector<8x16xf32>
    %55 = vector.broadcast %cst_8 : f32 to vector<8x16xf32>
    %56 = arith.select %54, %55, %50 : vector<8x16xi1>, vector<8x16xf32>
    %cst_17 = arith.constant dense<0xFF800000> : vector<8xf32>
    %57 = vector.multi_reduction <maximumf>, %56, %cst_17 [1] : vector<8x16xf32> to vector<8xf32>
    %58 = vector.shape_cast %57 : vector<8xf32> to vector<8x1xf32>
    %59 = arith.addf %52, %58 : vector<8x1xf32>
    %60 = vector.shape_cast %46 : vector<1x16xi1> to vector<1x16xi1>
    %61 = vector.broadcast %60 : vector<1x16xi1> to vector<8x16xi1>
    %62 = vector.shape_cast %59 : vector<8x1xf32> to vector<8x1xf32>
    %63 = vector.broadcast %62 : vector<8x1xf32> to vector<8x16xf32>
    %64 = arith.select %61, %63, %41 : vector<8x16xi1>, vector<8x16xf32>
    %c8_i32_18 = arith.constant 8 : i32
    %65 = vector.broadcast %c8_i32_18 : i32 to vector<1x16xi32>
    %66 = arith.cmpi sge, %10, %65 : vector<1x16xi32>
    %c12_i32 = arith.constant 12 : i32
    %67 = vector.broadcast %c12_i32 : i32 to vector<1x16xi32>
    %68 = arith.cmpi slt, %10, %67 : vector<1x16xi32>
    %69 = arith.andi %66, %68 : vector<1x16xi1>
    %70 = vector.shape_cast %69 : vector<1x16xi1> to vector<1x16xi1>
    %71 = vector.broadcast %70 : vector<1x16xi1> to vector<8x16xi1>
    %72 = vector.broadcast %cst_8 : f32 to vector<8x16xf32>
    %73 = arith.select %71, %17, %72 : vector<8x16xi1>, vector<8x16xf32>
    %cst_19 = arith.constant dense<0xFF800000> : vector<8xf32>
    %74 = vector.multi_reduction <maximumf>, %73, %cst_19 [1] : vector<8x16xf32> to vector<8xf32>
    %75 = vector.shape_cast %74 : vector<8xf32> to vector<8x1xf32>
    %76 = vector.broadcast %75 : vector<8x1xf32> to vector<8x16xf32>
    %77 = arith.cmpf oeq, %73, %76 : vector<8x16xf32>
    %78 = vector.broadcast %cst_8 : f32 to vector<8x16xf32>
    %79 = arith.select %77, %78, %73 : vector<8x16xi1>, vector<8x16xf32>
    %cst_20 = arith.constant dense<0xFF800000> : vector<8xf32>
    %80 = vector.multi_reduction <maximumf>, %79, %cst_20 [1] : vector<8x16xf32> to vector<8xf32>
    %81 = vector.shape_cast %80 : vector<8xf32> to vector<8x1xf32>
    %82 = arith.addf %75, %81 : vector<8x1xf32>
    %83 = vector.shape_cast %69 : vector<1x16xi1> to vector<1x16xi1>
    %84 = vector.broadcast %83 : vector<1x16xi1> to vector<8x16xi1>
    %85 = vector.shape_cast %82 : vector<8x1xf32> to vector<8x1xf32>
    %86 = vector.broadcast %85 : vector<8x1xf32> to vector<8x16xf32>
    %87 = arith.select %84, %86, %64 : vector<8x16xi1>, vector<8x16xf32>
    %c12_i32_21 = arith.constant 12 : i32
    %88 = vector.broadcast %c12_i32_21 : i32 to vector<1x16xi32>
    %89 = arith.cmpi sge, %10, %88 : vector<1x16xi32>
    %c16_i32 = arith.constant 16 : i32
    %90 = vector.broadcast %c16_i32 : i32 to vector<1x16xi32>
    %91 = arith.cmpi slt, %10, %90 : vector<1x16xi32>
    %92 = arith.andi %89, %91 : vector<1x16xi1>
    %93 = vector.shape_cast %92 : vector<1x16xi1> to vector<1x16xi1>
    %94 = vector.broadcast %93 : vector<1x16xi1> to vector<8x16xi1>
    %95 = vector.broadcast %cst_8 : f32 to vector<8x16xf32>
    %96 = arith.select %94, %17, %95 : vector<8x16xi1>, vector<8x16xf32>
    %cst_22 = arith.constant dense<0xFF800000> : vector<8xf32>
    %97 = vector.multi_reduction <maximumf>, %96, %cst_22 [1] : vector<8x16xf32> to vector<8xf32>
    %98 = vector.shape_cast %97 : vector<8xf32> to vector<8x1xf32>
    %99 = vector.broadcast %98 : vector<8x1xf32> to vector<8x16xf32>
    %100 = arith.cmpf oeq, %96, %99 : vector<8x16xf32>
    %101 = vector.broadcast %cst_8 : f32 to vector<8x16xf32>
    %102 = arith.select %100, %101, %96 : vector<8x16xi1>, vector<8x16xf32>
    %cst_23 = arith.constant dense<0xFF800000> : vector<8xf32>
    %103 = vector.multi_reduction <maximumf>, %102, %cst_23 [1] : vector<8x16xf32> to vector<8xf32>
    %104 = vector.shape_cast %103 : vector<8xf32> to vector<8x1xf32>
    %105 = arith.addf %98, %104 : vector<8x1xf32>
    %106 = vector.shape_cast %92 : vector<1x16xi1> to vector<1x16xi1>
    %107 = vector.broadcast %106 : vector<1x16xi1> to vector<8x16xi1>
    %108 = vector.shape_cast %105 : vector<8x1xf32> to vector<8x1xf32>
    %109 = vector.broadcast %108 : vector<8x1xf32> to vector<8x16xf32>
    %110 = arith.select %107, %109, %87 : vector<8x16xi1>, vector<8x16xf32>
    %cst_24 = arith.constant 0.000000e+00 : f32
    %111 = vector.broadcast %cst_24 : f32 to vector<8x16xf32>
    %cst_25 = arith.constant dense<0xFF800000> : vector<8xf32>
    %112 = vector.multi_reduction <maximumf>, %110, %cst_25 [1] : vector<8x16xf32> to vector<8xf32>
    %113 = vector.shape_cast %112 : vector<8xf32> to vector<8x1xf32>
    %114 = vector.broadcast %113 : vector<8x1xf32> to vector<8x16xf32>
    %115 = arith.cmpf oeq, %110, %114 : vector<8x16xf32>
    %116 = arith.select %115, %17, %111 : vector<8x16xi1>, vector<8x16xf32>
    %117 = vector.broadcast %cst_8 : f32 to vector<8x16xf32>
    %118 = arith.select %115, %117, %110 : vector<8x16xi1>, vector<8x16xf32>
    %cst_26 = arith.constant dense<0xFF800000> : vector<8xf32>
    %119 = vector.multi_reduction <maximumf>, %118, %cst_26 [1] : vector<8x16xf32> to vector<8xf32>
    %120 = vector.shape_cast %119 : vector<8xf32> to vector<8x1xf32>
    %121 = vector.broadcast %120 : vector<8x1xf32> to vector<8x16xf32>
    %122 = arith.cmpf oeq, %118, %121 : vector<8x16xf32>
    %123 = arith.select %122, %17, %116 : vector<8x16xi1>, vector<8x16xf32>
    %cst_27 = arith.constant dense<0xFF800000> : vector<8xf32>
    %124 = vector.multi_reduction <maximumf>, %123, %cst_27 [1] : vector<8x16xf32> to vector<8xf32>
    %125 = vector.shape_cast %124 : vector<8xf32> to vector<8x1xf32>
    %126 = vector.broadcast %125 : vector<8x1xf32> to vector<8x16xf32>
    %127 = arith.cmpf oeq, %123, %126 : vector<8x16xf32>
    %c16_i32_28 = arith.constant 16 : i32
    %128 = vector.shape_cast %10 : vector<1x16xi32> to vector<1x16xi32>
    %129 = vector.broadcast %128 : vector<1x16xi32> to vector<8x16xi32>
    %130 = vector.broadcast %c16_i32_28 : i32 to vector<8x16xi32>
    %131 = arith.select %127, %129, %130 : vector<8x16xi1>, vector<8x16xi32>
    %cst_29 = arith.constant dense<2147483647> : vector<8xi32>
    %132 = vector.multi_reduction <minsi>, %131, %cst_29 [1] : vector<8x16xi32> to vector<8xi32>
    %133 = vector.shape_cast %132 : vector<8xi32> to vector<8x1xi32>
    %134 = vector.broadcast %10 : vector<1x16xi32> to vector<8x16xi32>
    %135 = vector.broadcast %133 : vector<8x1xi32> to vector<8x16xi32>
    %136 = arith.cmpi eq, %134, %135 : vector<8x16xi32>
    %cst_30 = arith.constant 0.000000e+00 : f32
    %137 = vector.broadcast %cst_30 : f32 to vector<8x16xf32>
    %138 = arith.select %136, %15, %137 : vector<8x16xi1>, vector<8x16xf32>
    %cst_31 = arith.constant dense<0.000000e+00> : vector<8xf32>
    %139 = vector.multi_reduction <add>, %138, %cst_31 [1] : vector<8x16xf32> to vector<8xf32>
    %140 = vector.shape_cast %139 : vector<8xf32> to vector<8x1xf32>
    %141 = arith.sitofp %133 : vector<8x1xi32> to vector<8x1xf32>
    %142 = vector.broadcast %cst_8 : f32 to vector<8x16xf32>
    %143 = arith.select %136, %142, %123 : vector<8x16xi1>, vector<8x16xf32>
    %cst_32 = arith.constant dense<0xFF800000> : vector<8xf32>
    %144 = vector.multi_reduction <maximumf>, %143, %cst_32 [1] : vector<8x16xf32> to vector<8xf32>
    %145 = vector.shape_cast %144 : vector<8xf32> to vector<8x1xf32>
    %146 = vector.broadcast %145 : vector<8x1xf32> to vector<8x16xf32>
    %147 = arith.cmpf oeq, %143, %146 : vector<8x16xf32>
    %c16_i32_33 = arith.constant 16 : i32
    %148 = vector.shape_cast %10 : vector<1x16xi32> to vector<1x16xi32>
    %149 = vector.broadcast %148 : vector<1x16xi32> to vector<8x16xi32>
    %150 = vector.broadcast %c16_i32_33 : i32 to vector<8x16xi32>
    %151 = arith.select %147, %149, %150 : vector<8x16xi1>, vector<8x16xi32>
    %cst_34 = arith.constant dense<2147483647> : vector<8xi32>
    %152 = vector.multi_reduction <minsi>, %151, %cst_34 [1] : vector<8x16xi32> to vector<8xi32>
    %153 = vector.shape_cast %152 : vector<8xi32> to vector<8x1xi32>
    %154 = vector.broadcast %10 : vector<1x16xi32> to vector<8x16xi32>
    %155 = vector.broadcast %153 : vector<8x1xi32> to vector<8x16xi32>
    %156 = arith.cmpi eq, %154, %155 : vector<8x16xi32>
    %cst_35 = arith.constant 0.000000e+00 : f32
    %157 = vector.broadcast %cst_35 : f32 to vector<8x16xf32>
    %158 = arith.select %156, %15, %157 : vector<8x16xi1>, vector<8x16xf32>
    %cst_36 = arith.constant dense<0.000000e+00> : vector<8xf32>
    %159 = vector.multi_reduction <add>, %158, %cst_36 [1] : vector<8x16xf32> to vector<8xf32>
    %160 = vector.shape_cast %159 : vector<8xf32> to vector<8x1xf32>
    %161 = arith.sitofp %153 : vector<8x1xi32> to vector<8x1xf32>
    %162 = vector.broadcast %cst_8 : f32 to vector<8x16xf32>
    %163 = arith.select %156, %162, %143 : vector<8x16xi1>, vector<8x16xf32>
    %cst_37 = arith.constant dense<0xFF800000> : vector<8xf32>
    %164 = vector.multi_reduction <maximumf>, %163, %cst_37 [1] : vector<8x16xf32> to vector<8xf32>
    %165 = vector.shape_cast %164 : vector<8xf32> to vector<8x1xf32>
    %166 = vector.broadcast %165 : vector<8x1xf32> to vector<8x16xf32>
    %167 = arith.cmpf oeq, %163, %166 : vector<8x16xf32>
    %c16_i32_38 = arith.constant 16 : i32
    %168 = vector.shape_cast %10 : vector<1x16xi32> to vector<1x16xi32>
    %169 = vector.broadcast %168 : vector<1x16xi32> to vector<8x16xi32>
    %170 = vector.broadcast %c16_i32_38 : i32 to vector<8x16xi32>
    %171 = arith.select %167, %169, %170 : vector<8x16xi1>, vector<8x16xi32>
    %cst_39 = arith.constant dense<2147483647> : vector<8xi32>
    %172 = vector.multi_reduction <minsi>, %171, %cst_39 [1] : vector<8x16xi32> to vector<8xi32>
    %173 = vector.shape_cast %172 : vector<8xi32> to vector<8x1xi32>
    %174 = vector.broadcast %10 : vector<1x16xi32> to vector<8x16xi32>
    %175 = vector.broadcast %173 : vector<8x1xi32> to vector<8x16xi32>
    %176 = arith.cmpi eq, %174, %175 : vector<8x16xi32>
    %cst_40 = arith.constant 0.000000e+00 : f32
    %177 = vector.broadcast %cst_40 : f32 to vector<8x16xf32>
    %178 = arith.select %176, %15, %177 : vector<8x16xi1>, vector<8x16xf32>
    %cst_41 = arith.constant dense<0.000000e+00> : vector<8xf32>
    %179 = vector.multi_reduction <add>, %178, %cst_41 [1] : vector<8x16xf32> to vector<8xf32>
    %180 = vector.shape_cast %179 : vector<8xf32> to vector<8x1xf32>
    %181 = arith.sitofp %173 : vector<8x1xi32> to vector<8x1xf32>
    %182 = vector.broadcast %cst_8 : f32 to vector<8x16xf32>
    %183 = arith.select %176, %182, %163 : vector<8x16xi1>, vector<8x16xf32>
    %cst_42 = arith.constant dense<0xFF800000> : vector<8xf32>
    %184 = vector.multi_reduction <maximumf>, %183, %cst_42 [1] : vector<8x16xf32> to vector<8xf32>
    %185 = vector.shape_cast %184 : vector<8xf32> to vector<8x1xf32>
    %186 = vector.broadcast %185 : vector<8x1xf32> to vector<8x16xf32>
    %187 = arith.cmpf oeq, %183, %186 : vector<8x16xf32>
    %c16_i32_43 = arith.constant 16 : i32
    %188 = vector.shape_cast %10 : vector<1x16xi32> to vector<1x16xi32>
    %189 = vector.broadcast %188 : vector<1x16xi32> to vector<8x16xi32>
    %190 = vector.broadcast %c16_i32_43 : i32 to vector<8x16xi32>
    %191 = arith.select %187, %189, %190 : vector<8x16xi1>, vector<8x16xi32>
    %cst_44 = arith.constant dense<2147483647> : vector<8xi32>
    %192 = vector.multi_reduction <minsi>, %191, %cst_44 [1] : vector<8x16xi32> to vector<8xi32>
    %193 = vector.shape_cast %192 : vector<8xi32> to vector<8x1xi32>
    %194 = vector.broadcast %10 : vector<1x16xi32> to vector<8x16xi32>
    %195 = vector.broadcast %193 : vector<8x1xi32> to vector<8x16xi32>
    %196 = arith.cmpi eq, %194, %195 : vector<8x16xi32>
    %cst_45 = arith.constant 0.000000e+00 : f32
    %197 = vector.broadcast %cst_45 : f32 to vector<8x16xf32>
    %198 = arith.select %196, %15, %197 : vector<8x16xi1>, vector<8x16xf32>
    %cst_46 = arith.constant dense<0.000000e+00> : vector<8xf32>
    %199 = vector.multi_reduction <add>, %198, %cst_46 [1] : vector<8x16xf32> to vector<8xf32>
    %200 = vector.shape_cast %199 : vector<8xf32> to vector<8x1xf32>
    %201 = arith.sitofp %193 : vector<8x1xi32> to vector<8x1xf32>
    %cst_47 = arith.constant 2.500000e+00 : f32
    %202 = vector.broadcast %cst_47 : f32 to vector<8x1xf32>
    %203 = arith.mulf %140, %202 : vector<8x1xf32>
    %cst_48 = arith.constant 2.500000e+00 : f32
    %204 = vector.broadcast %cst_48 : f32 to vector<8x1xf32>
    %205 = arith.mulf %160, %204 : vector<8x1xf32>
    %cst_49 = arith.constant 2.500000e+00 : f32
    %206 = vector.broadcast %cst_49 : f32 to vector<8x1xf32>
    %207 = arith.mulf %180, %206 : vector<8x1xf32>
    %cst_50 = arith.constant 2.500000e+00 : f32
    %208 = vector.broadcast %cst_50 : f32 to vector<8x1xf32>
    %209 = arith.mulf %200, %208 : vector<8x1xf32>
    %cst_51 = arith.constant 0.000000e+00 : f32
    %210 = vector.broadcast %cst_51 : f32 to vector<8x128xf32>
    %c0_i32_52 = arith.constant 0 : i32
    %211 = vector.broadcast %c0_i32_52 : i32 to vector<1x128xi32>
    %212 = arith.cmpi eq, %11, %211 : vector<1x128xi32>
    %213 = vector.shape_cast %212 : vector<1x128xi1> to vector<1x128xi1>
    %214 = vector.broadcast %213 : vector<1x128xi1> to vector<8x128xi1>
    %215 = vector.shape_cast %203 : vector<8x1xf32> to vector<8x1xf32>
    %216 = vector.broadcast %215 : vector<8x1xf32> to vector<8x128xf32>
    %217 = arith.select %214, %216, %210 : vector<8x128xi1>, vector<8x128xf32>
    %c64_i32 = arith.constant 64 : i32
    %218 = vector.broadcast %c64_i32 : i32 to vector<1x128xi32>
    %219 = arith.cmpi eq, %11, %218 : vector<1x128xi32>
    %220 = vector.shape_cast %219 : vector<1x128xi1> to vector<1x128xi1>
    %221 = vector.broadcast %220 : vector<1x128xi1> to vector<8x128xi1>
    %222 = vector.shape_cast %141 : vector<8x1xf32> to vector<8x1xf32>
    %223 = vector.broadcast %222 : vector<8x1xf32> to vector<8x128xf32>
    %224 = arith.select %221, %223, %217 : vector<8x128xi1>, vector<8x128xf32>
    %c1_i32 = arith.constant 1 : i32
    %225 = vector.broadcast %c1_i32 : i32 to vector<1x128xi32>
    %226 = arith.cmpi eq, %11, %225 : vector<1x128xi32>
    %227 = vector.shape_cast %226 : vector<1x128xi1> to vector<1x128xi1>
    %228 = vector.broadcast %227 : vector<1x128xi1> to vector<8x128xi1>
    %229 = vector.shape_cast %205 : vector<8x1xf32> to vector<8x1xf32>
    %230 = vector.broadcast %229 : vector<8x1xf32> to vector<8x128xf32>
    %231 = arith.select %228, %230, %224 : vector<8x128xi1>, vector<8x128xf32>
    %c65_i32 = arith.constant 65 : i32
    %232 = vector.broadcast %c65_i32 : i32 to vector<1x128xi32>
    %233 = arith.cmpi eq, %11, %232 : vector<1x128xi32>
    %234 = vector.shape_cast %233 : vector<1x128xi1> to vector<1x128xi1>
    %235 = vector.broadcast %234 : vector<1x128xi1> to vector<8x128xi1>
    %236 = vector.shape_cast %161 : vector<8x1xf32> to vector<8x1xf32>
    %237 = vector.broadcast %236 : vector<8x1xf32> to vector<8x128xf32>
    %238 = arith.select %235, %237, %231 : vector<8x128xi1>, vector<8x128xf32>
    %c2_i32 = arith.constant 2 : i32
    %239 = vector.broadcast %c2_i32 : i32 to vector<1x128xi32>
    %240 = arith.cmpi eq, %11, %239 : vector<1x128xi32>
    %241 = vector.shape_cast %240 : vector<1x128xi1> to vector<1x128xi1>
    %242 = vector.broadcast %241 : vector<1x128xi1> to vector<8x128xi1>
    %243 = vector.shape_cast %207 : vector<8x1xf32> to vector<8x1xf32>
    %244 = vector.broadcast %243 : vector<8x1xf32> to vector<8x128xf32>
    %245 = arith.select %242, %244, %238 : vector<8x128xi1>, vector<8x128xf32>
    %c66_i32 = arith.constant 66 : i32
    %246 = vector.broadcast %c66_i32 : i32 to vector<1x128xi32>
    %247 = arith.cmpi eq, %11, %246 : vector<1x128xi32>
    %248 = vector.shape_cast %247 : vector<1x128xi1> to vector<1x128xi1>
    %249 = vector.broadcast %248 : vector<1x128xi1> to vector<8x128xi1>
    %250 = vector.shape_cast %181 : vector<8x1xf32> to vector<8x1xf32>
    %251 = vector.broadcast %250 : vector<8x1xf32> to vector<8x128xf32>
    %252 = arith.select %249, %251, %245 : vector<8x128xi1>, vector<8x128xf32>
    %c3_i32 = arith.constant 3 : i32
    %253 = vector.broadcast %c3_i32 : i32 to vector<1x128xi32>
    %254 = arith.cmpi eq, %11, %253 : vector<1x128xi32>
    %255 = vector.shape_cast %254 : vector<1x128xi1> to vector<1x128xi1>
    %256 = vector.broadcast %255 : vector<1x128xi1> to vector<8x128xi1>
    %257 = vector.shape_cast %209 : vector<8x1xf32> to vector<8x1xf32>
    %258 = vector.broadcast %257 : vector<8x1xf32> to vector<8x128xf32>
    %259 = arith.select %256, %258, %252 : vector<8x128xi1>, vector<8x128xf32>
    %c67_i32 = arith.constant 67 : i32
    %260 = vector.broadcast %c67_i32 : i32 to vector<1x128xi32>
    %261 = arith.cmpi eq, %11, %260 : vector<1x128xi32>
    %262 = vector.shape_cast %261 : vector<1x128xi1> to vector<1x128xi1>
    %263 = vector.broadcast %262 : vector<1x128xi1> to vector<8x128xi1>
    %264 = vector.shape_cast %201 : vector<8x1xf32> to vector<8x1xf32>
    %265 = vector.broadcast %264 : vector<8x1xf32> to vector<8x128xf32>
    %266 = arith.select %263, %265, %259 : vector<8x128xi1>, vector<8x128xf32>
    %267 = arith.index_cast %13 : i32 to index
    %c0_53 = arith.constant 0 : index
    %268 = vector.load %arg4[%267, %c0_53] : memref<8x128xf32, #tpu.memory_space<vmem>>, vector<8x128xf32>
    tpu.vector_store %arg4[%267, %c0_53], %266 {strides = array<i32>} : memref<8x128xf32, #tpu.memory_space<vmem>>, vector<8x128xf32>,
    %c1_i32_54 = arith.constant 1 : i32
    return
  }
  func.func @transform_0(%arg0: i32) -> (i32, i32) {
    %c0_i32 = arith.constant 0 : i32
    %c0_i32_0 = arith.constant 0 : i32
    return %arg0, %c0_i32 : i32, i32
  }
  func.func @transform_1(%arg0: i32) -> (i32, i32) {
    %c0_i32 = arith.constant 0 : i32
    %c0_i32_0 = arith.constant 0 : i32
    %c0_i32_1 = arith.constant 0 : i32
    return %c0_i32, %c0_i32_0 : i32, i32
  }
  func.func @transform_2(%arg0: i32) -> (i32, i32) {
    %c0_i32 = arith.constant 0 : i32
    %c0_i32_0 = arith.constant 0 : i32
    %c0_i32_1 = arith.constant 0 : i32
    return %c0_i32, %c0_i32_0 : i32, i32
  }
  func.func @transform_3(%arg0: i32) -> (i32, i32) {
    %c0_i32 = arith.constant 0 : i32
    %c0_i32_0 = arith.constant 0 : i32
    return %arg0, %c0_i32 : i32, i32
  }
}

module attributes {stable_mosaic.version = 11 : i64} {
  func.func @_router_kernel(%arg0: i32, %arg1: memref<8x32xbf16, #tpu.memory_space<vmem>>, %arg2: memref<32x16xbf16, #tpu.memory_space<vmem>>, %arg3: memref<1x16xf32, #tpu.memory_space<vmem>>, %arg4: memref<8x128xf32, #tpu.memory_space<vmem>>, %arg5: memref<8x16xf32, #tpu.memory_space<vmem>>) attributes {dimension_semantics = [#tpu.dimension_semantics<parallel>], iteration_bounds = array<i64: 2>, scalar_prefetch = 0 : i64, scratch_operands = 1 : i64, tpu.core_type = #tpu.core_type<tc>, window_params = [{transform_indices = @transform_0, window_bounds = array<i64: 8, 32>}, {pipeline_mode = #tpu.pipeline_mode<synchronous>, transform_indices = @transform_1, window_bounds = array<i64: 32, 16>}, {pipeline_mode = #tpu.pipeline_mode<synchronous>, transform_indices = @transform_2, window_bounds = array<i64: 1, 16>}, {transform_indices = @transform_3, window_bounds = array<i64: 8, 128>}]} {
    %c0 = arith.constant 0 : index
    %c0_0 = arith.constant 0 : index
    %0 = vector.load %arg1[%c0, %c0_0] : memref<8x32xbf16, #tpu.memory_space<vmem>>, vector<8x32xbf16>
    %c0_1 = arith.constant 0 : index
    %c0_2 = arith.constant 0 : index
    %1 = vector.load %arg2[%c0_1, %c0_2] : memref<32x16xbf16, #tpu.memory_space<vmem>>, vector<32x16xbf16>
    %cst = arith.constant dense<0.000000e+00> : vector<8x16xf32>
    %2 = tpu.matmul %0, %1, %cst {dimension_numbers = #tpu.dot_dimension_numbers<[1], [0], [0], [1], [0, 0, 1, 1], [], []>} : vector<8x32xbf16>, vector<32x16xbf16>, vector<8x16xf32> -> vector<8x16xf32>
    %3 = arith.negf %2 : vector<8x16xf32>
    %4 = math.exp %3 : vector<8x16xf32>
    %cst_3 = arith.constant 1.000000e+00 : f32
    %5 = vector.broadcast %cst_3 : f32 to vector<8x16xf32>
    %6 = arith.addf %5, %4 : vector<8x16xf32>
    %7 = arith.divf %5, %6 : vector<8x16xf32>
    %c0_4 = arith.constant 0 : index
    %c0_5 = arith.constant 0 : index
    %8 = vector.load %arg5[%c0_4, %c0_5] : memref<8x16xf32, #tpu.memory_space<vmem>>, vector<8x16xf32>
    tpu.vector_store %arg5[%c0_4, %c0_5], %7 {strides = array<i32>} : memref<8x16xf32, #tpu.memory_space<vmem>>, vector<8x16xf32>,
    %c0_6 = arith.constant 0 : index
    %c0_7 = arith.constant 0 : index
    %9 = vector.load %arg3[%c0_6, %c0_7] : memref<1x16xf32, #tpu.memory_space<vmem>>, vector<1x16xf32>
    %10 = tpu.iota {dimensions = array<i32: 1>} : vector<1x16xi32>
    %11 = tpu.iota {dimensions = array<i32: 1>} : vector<1x128xi32>
    %cst_8 = arith.constant -1.000000e+30 : f32
    %c0_i32 = arith.constant 0 : i32
    %c8_i32 = arith.constant 8 : i32
    %12 = arith.muli %c0_i32, %c8_i32 : i32
    %13 = tpu.assume_multiple %12, 8 : i32
    %14 = arith.index_cast %13 : i32 to index
    %c0_9 = arith.constant 0 : index
    %15 = vector.load %arg5[%14, %c0_9] : memref<8x16xf32, #tpu.memory_space<vmem>>, vector<8x16xf32>
    %16 = vector.broadcast %9 : vector<1x16xf32> to vector<8x16xf32>
    %17 = arith.addf %15, %16 : vector<8x16xf32>
    %cst_10 = arith.constant 0.000000e+00 : f32
    %18 = vector.broadcast %cst_10 : f32 to vector<8x16xf32>
    %c0_i32_11 = arith.constant 0 : i32
    %19 = vector.broadcast %c0_i32_11 : i32 to vector<1x16xi32>
    %20 = arith.cmpi sge, %10, %19 : vector<1x16xi32>
    %c4_i32 = arith.constant 4 : i32
    %21 = vector.broadcast %c4_i32 : i32 to vector<1x16xi32>
    %22 = arith.cmpi slt, %10, %21 : vector<1x16xi32>
    %23 = arith.andi %20, %22 : vector<1x16xi1>
    %24 = vector.shape_cast %23 : vector<1x16xi1> to vector<1x16xi1>
    %25 = vector.broadcast %24 : vector<1x16xi1> to vector<8x16xi1>
    %26 = vector.broadcast %cst_8 : f32 to vector<8x16xf32>
    %27 = arith.select %25, %17, %26 : vector<8x16xi1>, vector<8x16xf32>
    %cst_12 = arith.constant dense<0xFF800000> : vector<8xf32>
    %28 = vector.multi_reduction <maximumf>, %27, %cst_12 [1] : vector<8x16xf32> to vector<8xf32>
    %29 = vector.shape_cast %28 : vector<8xf32> to vector<8x1xf32>
    %30 = vector.broadcast %29 : vector<8x1xf32> to vector<8x16xf32>
    %31 = arith.cmpf oeq, %27, %30 : vector<8x16xf32>
    %32 = vector.broadcast %cst_8 : f32 to vector<8x16xf32>
    %33 = arith.select %31, %32, %27 : vector<8x16xi1>, vector<8x16xf32>
    %cst_13 = arith.constant dense<0xFF800000> : vector<8xf32>
    %34 = vector.multi_reduction <maximumf>, %33, %cst_13 [1] : vector<8x16xf32> to vector<8xf32>
    %35 = vector.shape_cast %34 : vector<8xf32> to vector<8x1xf32>
    %36 = arith.addf %29, %35 : vector<8x1xf32>
    %37 = vector.shape_cast %23 : vector<1x16xi1> to vector<1x16xi1>
    %38 = vector.broadcast %37 : vector<1x16xi1> to vector<8x16xi1>
    %39 = vector.shape_cast %36 : vector<8x1xf32> to vector<8x1xf32>
    %40 = vector.broadcast %39 : vector<8x1xf32> to vector<8x16xf32>
    %41 = arith.select %38, %40, %18 : vector<8x16xi1>, vector<8x16xf32>
    %c4_i32_14 = arith.constant 4 : i32
    %42 = vector.broadcast %c4_i32_14 : i32 to vector<1x16xi32>
    %43 = arith.cmpi sge, %10, %42 : vector<1x16xi32>
    %c8_i32_15 = arith.constant 8 : i32
    %44 = vector.broadcast %c8_i32_15 : i32 to vector<1x16xi32>
    %45 = arith.cmpi slt, %10, %44 : vector<1x16xi32>
    %46 = arith.andi %43, %45 : vector<1x16xi1>
    %47 = vector.shape_cast %46 : vector<1x16xi1> to vector<1x16xi1>
    %48 = vector.broadcast %47 : vector<1x16xi1> to vector<8x16xi1>
    %49 = vector.broadcast %cst_8 : f32 to vector<8x16xf32>
    %50 = arith.select %48, %17, %49 : vector<8x16xi1>, vector<8x16xf32>
    %cst_16 = arith.constant dense<0xFF800000> : vector<8xf32>
    %51 = vector.multi_reduction <maximumf>, %50, %cst_16 [1] : vector<8x16xf32> to vector<8xf32>
    %52 = vector.shape_cast %51 : vector<8xf32> to vector<8x1xf32>
    %53 = vector.broadcast %52 : vector<8x1xf32> to vector<8x16xf32>
    %54 = arith.cmpf oeq, %50, %53 : vector<8x16xf32>
    %55 = vector.broadcast %cst_8 : f32 to vector<8x16xf32>
    %56 = arith.select %54, %55, %50 : vector<8x16xi1>, vector<8x16xf32>
    %cst_17 = arith.constant dense<0xFF800000> : vector<8xf32>
    %57 = vector.multi_reduction <maximumf>, %56, %cst_17 [1] : vector<8x16xf32> to vector<8xf32>
    %58 = vector.shape_cast %57 : vector<8xf32> to vector<8x1xf32>
    %59 = arith.addf %52, %58 : vector<8x1xf32>
    %60 = vector.shape_cast %46 : vector<1x16xi1> to vector<1x16xi1>
    %61 = vector.broadcast %60 : vector<1x16xi1> to vector<8x16xi1>
    %62 = vector.shape_cast %59 : vector<8x1xf32> to vector<8x1xf32>
    %63 = vector.broadcast %62 : vector<8x1xf32> to vector<8x16xf32>
    %64 = arith.select %61, %63, %41 : vector<8x16xi1>, vector<8x16xf32>
    %c8_i32_18 = arith.constant 8 : i32
    %65 = vector.broadcast %c8_i32_18 : i32 to vector<1x16xi32>
    %66 = arith.cmpi sge, %10, %65 : vector<1x16xi32>
    %c12_i32 = arith.constant 12 : i32
    %67 = vector.broadcast %c12_i32 : i32 to vector<1x16xi32>
    %68 = arith.cmpi slt, %10, %67 : vector<1x16xi32>
    %69 = arith.andi %66, %68 : vector<1x16xi1>
    %70 = vector.shape_cast %69 : vector<1x16xi1> to vector<1x16xi1>
    %71 = vector.broadcast %70 : vector<1x16xi1> to vector<8x16xi1>
    %72 = vector.broadcast %cst_8 : f32 to vector<8x16xf32>
    %73 = arith.select %71, %17, %72 : vector<8x16xi1>, vector<8x16xf32>
    %cst_19 = arith.constant dense<0xFF800000> : vector<8xf32>
    %74 = vector.multi_reduction <maximumf>, %73, %cst_19 [1] : vector<8x16xf32> to vector<8xf32>
    %75 = vector.shape_cast %74 : vector<8xf32> to vector<8x1xf32>
    %76 = vector.broadcast %75 : vector<8x1xf32> to vector<8x16xf32>
    %77 = arith.cmpf oeq, %73, %76 : vector<8x16xf32>
    %78 = vector.broadcast %cst_8 : f32 to vector<8x16xf32>
    %79 = arith.select %77, %78, %73 : vector<8x16xi1>, vector<8x16xf32>
    %cst_20 = arith.constant dense<0xFF800000> : vector<8xf32>
    %80 = vector.multi_reduction <maximumf>, %79, %cst_20 [1] : vector<8x16xf32> to vector<8xf32>
    %81 = vector.shape_cast %80 : vector<8xf32> to vector<8x1xf32>
    %82 = arith.addf %75, %81 : vector<8x1xf32>
    %83 = vector.shape_cast %69 : vector<1x16xi1> to vector<1x16xi1>
    %84 = vector.broadcast %83 : vector<1x16xi1> to vector<8x16xi1>
    %85 = vector.shape_cast %82 : vector<8x1xf32> to vector<8x1xf32>
    %86 = vector.broadcast %85 : vector<8x1xf32> to vector<8x16xf32>
    %87 = arith.select %84, %86, %64 : vector<8x16xi1>, vector<8x16xf32>
    %c12_i32_21 = arith.constant 12 : i32
    %88 = vector.broadcast %c12_i32_21 : i32 to vector<1x16xi32>
    %89 = arith.cmpi sge, %10, %88 : vector<1x16xi32>
    %c16_i32 = arith.constant 16 : i32
    %90 = vector.broadcast %c16_i32 : i32 to vector<1x16xi32>
    %91 = arith.cmpi slt, %10, %90 : vector<1x16xi32>
    %92 = arith.andi %89, %91 : vector<1x16xi1>
    %93 = vector.shape_cast %92 : vector<1x16xi1> to vector<1x16xi1>
    %94 = vector.broadcast %93 : vector<1x16xi1> to vector<8x16xi1>
    %95 = vector.broadcast %cst_8 : f32 to vector<8x16xf32>
    %96 = arith.select %94, %17, %95 : vector<8x16xi1>, vector<8x16xf32>
    %cst_22 = arith.constant dense<0xFF800000> : vector<8xf32>
    %97 = vector.multi_reduction <maximumf>, %96, %cst_22 [1] : vector<8x16xf32> to vector<8xf32>
    %98 = vector.shape_cast %97 : vector<8xf32> to vector<8x1xf32>
    %99 = vector.broadcast %98 : vector<8x1xf32> to vector<8x16xf32>
    %100 = arith.cmpf oeq, %96, %99 : vector<8x16xf32>
    %101 = vector.broadcast %cst_8 : f32 to vector<8x16xf32>
    %102 = arith.select %100, %101, %96 : vector<8x16xi1>, vector<8x16xf32>
    %cst_23 = arith.constant dense<0xFF800000> : vector<8xf32>
    %103 = vector.multi_reduction <maximumf>, %102, %cst_23 [1] : vector<8x16xf32> to vector<8xf32>
    %104 = vector.shape_cast %103 : vector<8xf32> to vector<8x1xf32>
    %105 = arith.addf %98, %104 : vector<8x1xf32>
    %106 = vector.shape_cast %92 : vector<1x16xi1> to vector<1x16xi1>
    %107 = vector.broadcast %106 : vector<1x16xi1> to vector<8x16xi1>
    %108 = vector.shape_cast %105 : vector<8x1xf32> to vector<8x1xf32>
    %109 = vector.broadcast %108 : vector<8x1xf32> to vector<8x16xf32>
    %110 = arith.select %107, %109, %87 : vector<8x16xi1>, vector<8x16xf32>
    %cst_24 = arith.constant 0.000000e+00 : f32
    %111 = vector.broadcast %cst_24 : f32 to vector<8x16xf32>
    %cst_25 = arith.constant dense<0xFF800000> : vector<8xf32>
    %112 = vector.multi_reduction <maximumf>, %110, %cst_25 [1] : vector<8x16xf32> to vector<8xf32>
    %113 = vector.shape_cast %112 : vector<8xf32> to vector<8x1xf32>
    %114 = vector.broadcast %113 : vector<8x1xf32> to vector<8x16xf32>
    %115 = arith.cmpf oeq, %110, %114 : vector<8x16xf32>
    %116 = arith.select %115, %17, %111 : vector<8x16xi1>, vector<8x16xf32>
    %117 = vector.broadcast %cst_8 : f32 to vector<8x16xf32>
    %118 = arith.select %115, %117, %110 : vector<8x16xi1>, vector<8x16xf32>
    %cst_26 = arith.constant dense<0xFF800000> : vector<8xf32>
    %119 = vector.multi_reduction <maximumf>, %118, %cst_26 [1] : vector<8x16xf32> to vector<8xf32>
    %120 = vector.shape_cast %119 : vector<8xf32> to vector<8x1xf32>
    %121 = vector.broadcast %120 : vector<8x1xf32> to vector<8x16xf32>
    %122 = arith.cmpf oeq, %118, %121 : vector<8x16xf32>
    %123 = arith.select %122, %17, %116 : vector<8x16xi1>, vector<8x16xf32>
    %cst_27 = arith.constant dense<0xFF800000> : vector<8xf32>
    %124 = vector.multi_reduction <maximumf>, %123, %cst_27 [1] : vector<8x16xf32> to vector<8xf32>
    %125 = vector.shape_cast %124 : vector<8xf32> to vector<8x1xf32>
    %126 = vector.broadcast %125 : vector<8x1xf32> to vector<8x16xf32>
    %127 = arith.cmpf oeq, %123, %126 : vector<8x16xf32>
    %c16_i32_28 = arith.constant 16 : i32
    %128 = vector.shape_cast %10 : vector<1x16xi32> to vector<1x16xi32>
    %129 = vector.broadcast %128 : vector<1x16xi32> to vector<8x16xi32>
    %130 = vector.broadcast %c16_i32_28 : i32 to vector<8x16xi32>
    %131 = arith.select %127, %129, %130 : vector<8x16xi1>, vector<8x16xi32>
    %cst_29 = arith.constant dense<2147483647> : vector<8xi32>
    %132 = vector.multi_reduction <minsi>, %131, %cst_29 [1] : vector<8x16xi32> to vector<8xi32>
    %133 = vector.shape_cast %132 : vector<8xi32> to vector<8x1xi32>
    %134 = vector.broadcast %10 : vector<1x16xi32> to vector<8x16xi32>
    %135 = vector.broadcast %133 : vector<8x1xi32> to vector<8x16xi32>
    %136 = arith.cmpi eq, %134, %135 : vector<8x16xi32>
    %cst_30 = arith.constant 0.000000e+00 : f32
    %137 = vector.broadcast %cst_30 : f32 to vector<8x16xf32>
    %138 = arith.select %136, %15, %137 : vector<8x16xi1>, vector<8x16xf32>
    %cst_31 = arith.constant dense<0.000000e+00> : vector<8xf32>
    %139 = vector.multi_reduction <add>, %138, %cst_31 [1] : vector<8x16xf32> to vector<8xf32>
    %140 = vector.shape_cast %139 : vector<8xf32> to vector<8x1xf32>
    %141 = arith.sitofp %133 : vector<8x1xi32> to vector<8x1xf32>
    %142 = vector.broadcast %cst_8 : f32 to vector<8x16xf32>
    %143 = arith.select %136, %142, %123 : vector<8x16xi1>, vector<8x16xf32>
    %cst_32 = arith.constant dense<0xFF800000> : vector<8xf32>
    %144 = vector.multi_reduction <maximumf>, %143, %cst_32 [1] : vector<8x16xf32> to vector<8xf32>
    %145 = vector.shape_cast %144 : vector<8xf32> to vector<8x1xf32>
    %146 = vector.broadcast %145 : vector<8x1xf32> to vector<8x16xf32>
    %147 = arith.cmpf oeq, %143, %146 : vector<8x16xf32>
    %c16_i32_33 = arith.constant 16 : i32
    %148 = vector.shape_cast %10 : vector<1x16xi32> to vector<1x16xi32>
    %149 = vector.broadcast %148 : vector<1x16xi32> to vector<8x16xi32>
    %150 = vector.broadcast %c16_i32_33 : i32 to vector<8x16xi32>
    %151 = arith.select %147, %149, %150 : vector<8x16xi1>, vector<8x16xi32>
    %cst_34 = arith.constant dense<2147483647> : vector<8xi32>
    %152 = vector.multi_reduction <minsi>, %151, %cst_34 [1] : vector<8x16xi32> to vector<8xi32>
    %153 = vector.shape_cast %152 : vector<8xi32> to vector<8x1xi32>
    %154 = vector.broadcast %10 : vector<1x16xi32> to vector<8x16xi32>
    %155 = vector.broadcast %153 : vector<8x1xi32> to vector<8x16xi32>
    %156 = arith.cmpi eq, %154, %155 : vector<8x16xi32>
    %cst_35 = arith.constant 0.000000e+00 : f32
    %157 = vector.broadcast %cst_35 : f32 to vector<8x16xf32>
    %158 = arith.select %156, %15, %157 : vector<8x16xi1>, vector<8x16xf32>
    %cst_36 = arith.constant dense<0.000000e+00> : vector<8xf32>
    %159 = vector.multi_reduction <add>, %158, %cst_36 [1] : vector<8x16xf32> to vector<8xf32>
    %160 = vector.shape_cast %159 : vector<8xf32> to vector<8x1xf32>
    %161 = arith.sitofp %153 : vector<8x1xi32> to vector<8x1xf32>
    %162 = vector.broadcast %cst_8 : f32 to vector<8x16xf32>
    %163 = arith.select %156, %162, %143 : vector<8x16xi1>, vector<8x16xf32>
    %cst_37 = arith.constant dense<0xFF800000> : vector<8xf32>
    %164 = vector.multi_reduction <maximumf>, %163, %cst_37 [1] : vector<8x16xf32> to vector<8xf32>
    %165 = vector.shape_cast %164 : vector<8xf32> to vector<8x1xf32>
    %166 = vector.broadcast %165 : vector<8x1xf32> to vector<8x16xf32>
    %167 = arith.cmpf oeq, %163, %166 : vector<8x16xf32>
    %c16_i32_38 = arith.constant 16 : i32
    %168 = vector.shape_cast %10 : vector<1x16xi32> to vector<1x16xi32>
    %169 = vector.broadcast %168 : vector<1x16xi32> to vector<8x16xi32>
    %170 = vector.broadcast %c16_i32_38 : i32 to vector<8x16xi32>
    %171 = arith.select %167, %169, %170 : vector<8x16xi1>, vector<8x16xi32>
    %cst_39 = arith.constant dense<2147483647> : vector<8xi32>
    %172 = vector.multi_reduction <minsi>, %171, %cst_39 [1] : vector<8x16xi32> to vector<8xi32>
    %173 = vector.shape_cast %172 : vector<8xi32> to vector<8x1xi32>
    %174 = vector.broadcast %10 : vector<1x16xi32> to vector<8x16xi32>
    %175 = vector.broadcast %173 : vector<8x1xi32> to vector<8x16xi32>
    %176 = arith.cmpi eq, %174, %175 : vector<8x16xi32>
    %cst_40 = arith.constant 0.000000e+00 : f32
    %177 = vector.broadcast %cst_40 : f32 to vector<8x16xf32>
    %178 = arith.select %176, %15, %177 : vector<8x16xi1>, vector<8x16xf32>
    %cst_41 = arith.constant dense<0.000000e+00> : vector<8xf32>
    %179 = vector.multi_reduction <add>, %178, %cst_41 [1] : vector<8x16xf32> to vector<8xf32>
    %180 = vector.shape_cast %179 : vector<8xf32> to vector<8x1xf32>
    %181 = arith.sitofp %173 : vector<8x1xi32> to vector<8x1xf32>
    %182 = vector.broadcast %cst_8 : f32 to vector<8x16xf32>
    %183 = arith.select %176, %182, %163 : vector<8x16xi1>, vector<8x16xf32>
    %cst_42 = arith.constant dense<0xFF800000> : vector<8xf32>
    %184 = vector.multi_reduction <maximumf>, %183, %cst_42 [1] : vector<8x16xf32> to vector<8xf32>
    %185 = vector.shape_cast %184 : vector<8xf32> to vector<8x1xf32>
    %186 = vector.broadcast %185 : vector<8x1xf32> to vector<8x16xf32>
    %187 = arith.cmpf oeq, %183, %186 : vector<8x16xf32>
    %c16_i32_43 = arith.constant 16 : i32
    %188 = vector.shape_cast %10 : vector<1x16xi32> to vector<1x16xi32>
    %189 = vector.broadcast %188 : vector<1x16xi32> to vector<8x16xi32>
    %190 = vector.broadcast %c16_i32_43 : i32 to vector<8x16xi32>
    %191 = arith.select %187, %189, %190 : vector<8x16xi1>, vector<8x16xi32>
    %cst_44 = arith.constant dense<2147483647> : vector<8xi32>
    %192 = vector.multi_reduction <minsi>, %191, %cst_44 [1] : vector<8x16xi32> to vector<8xi32>
    %193 = vector.shape_cast %192 : vector<8xi32> to vector<8x1xi32>
    %194 = vector.broadcast %10 : vector<1x16xi32> to vector<8x16xi32>
    %195 = vector.broadcast %193 : vector<8x1xi32> to vector<8x16xi32>
    %196 = arith.cmpi eq, %194, %195 : vector<8x16xi32>
    %cst_45 = arith.constant 0.000000e+00 : f32
    %197 = vector.broadcast %cst_45 : f32 to vector<8x16xf32>
    %198 = arith.select %196, %15, %197 : vector<8x16xi1>, vector<8x16xf32>
    %cst_46 = arith.constant dense<0.000000e+00> : vector<8xf32>
    %199 = vector.multi_reduction <add>, %198, %cst_46 [1] : vector<8x16xf32> to vector<8xf32>
    %200 = vector.shape_cast %199 : vector<8xf32> to vector<8x1xf32>
    %201 = arith.sitofp %193 : vector<8x1xi32> to vector<8x1xf32>
    %cst_47 = arith.constant 2.500000e+00 : f32
    %202 = vector.broadcast %cst_47 : f32 to vector<8x1xf32>
    %203 = arith.mulf %140, %202 : vector<8x1xf32>
    %cst_48 = arith.constant 2.500000e+00 : f32
    %204 = vector.broadcast %cst_48 : f32 to vector<8x1xf32>
    %205 = arith.mulf %160, %204 : vector<8x1xf32>
    %cst_49 = arith.constant 2.500000e+00 : f32
    %206 = vector.broadcast %cst_49 : f32 to vector<8x1xf32>
    %207 = arith.mulf %180, %206 : vector<8x1xf32>
    %cst_50 = arith.constant 2.500000e+00 : f32
    %208 = vector.broadcast %cst_50 : f32 to vector<8x1xf32>
    %209 = arith.mulf %200, %208 : vector<8x1xf32>
    %cst_51 = arith.constant 0.000000e+00 : f32
    %210 = vector.broadcast %cst_51 : f32 to vector<8x128xf32>
    %c0_i32_52 = arith.constant 0 : i32
    %211 = vector.broadcast %c0_i32_52 : i32 to vector<1x128xi32>
    %212 = arith.cmpi eq, %11, %211 : vector<1x128xi32>
    %213 = vector.shape_cast %212 : vector<1x128xi1> to vector<1x128xi1>
    %214 = vector.broadcast %213 : vector<1x128xi1> to vector<8x128xi1>
    %215 = vector.shape_cast %203 : vector<8x1xf32> to vector<8x1xf32>
    %216 = vector.broadcast %215 : vector<8x1xf32> to vector<8x128xf32>
    %217 = arith.select %214, %216, %210 : vector<8x128xi1>, vector<8x128xf32>
    %c64_i32 = arith.constant 64 : i32
    %218 = vector.broadcast %c64_i32 : i32 to vector<1x128xi32>
    %219 = arith.cmpi eq, %11, %218 : vector<1x128xi32>
    %220 = vector.shape_cast %219 : vector<1x128xi1> to vector<1x128xi1>
    %221 = vector.broadcast %220 : vector<1x128xi1> to vector<8x128xi1>
    %222 = vector.shape_cast %141 : vector<8x1xf32> to vector<8x1xf32>
    %223 = vector.broadcast %222 : vector<8x1xf32> to vector<8x128xf32>
    %224 = arith.select %221, %223, %217 : vector<8x128xi1>, vector<8x128xf32>
    %c1_i32 = arith.constant 1 : i32
    %225 = vector.broadcast %c1_i32 : i32 to vector<1x128xi32>
    %226 = arith.cmpi eq, %11, %225 : vector<1x128xi32>
    %227 = vector.shape_cast %226 : vector<1x128xi1> to vector<1x128xi1>
    %228 = vector.broadcast %227 : vector<1x128xi1> to vector<8x128xi1>
    %229 = vector.shape_cast %205 : vector<8x1xf32> to vector<8x1xf32>
    %230 = vector.broadcast %229 : vector<8x1xf32> to vector<8x128xf32>
    %231 = arith.select %228, %230, %224 : vector<8x128xi1>, vector<8x128xf32>
    %c65_i32 = arith.constant 65 : i32
    %232 = vector.broadcast %c65_i32 : i32 to vector<1x128xi32>
    %233 = arith.cmpi eq, %11, %232 : vector<1x128xi32>
    %234 = vector.shape_cast %233 : vector<1x128xi1> to vector<1x128xi1>
    %235 = vector.broadcast %234 : vector<1x128xi1> to vector<8x128xi1>
    %236 = vector.shape_cast %161 : vector<8x1xf32> to vector<8x1xf32>
    %237 = vector.broadcast %236 : vector<8x1xf32> to vector<8x128xf32>
    %238 = arith.select %235, %237, %231 : vector<8x128xi1>, vector<8x128xf32>
    %c2_i32 = arith.constant 2 : i32
    %239 = vector.broadcast %c2_i32 : i32 to vector<1x128xi32>
    %240 = arith.cmpi eq, %11, %239 : vector<1x128xi32>
    %241 = vector.shape_cast %240 : vector<1x128xi1> to vector<1x128xi1>
    %242 = vector.broadcast %241 : vector<1x128xi1> to vector<8x128xi1>
    %243 = vector.shape_cast %207 : vector<8x1xf32> to vector<8x1xf32>
    %244 = vector.broadcast %243 : vector<8x1xf32> to vector<8x128xf32>
    %245 = arith.select %242, %244, %238 : vector<8x128xi1>, vector<8x128xf32>
    %c66_i32 = arith.constant 66 : i32
    %246 = vector.broadcast %c66_i32 : i32 to vector<1x128xi32>
    %247 = arith.cmpi eq, %11, %246 : vector<1x128xi32>
    %248 = vector.shape_cast %247 : vector<1x128xi1> to vector<1x128xi1>
    %249 = vector.broadcast %248 : vector<1x128xi1> to vector<8x128xi1>
    %250 = vector.shape_cast %181 : vector<8x1xf32> to vector<8x1xf32>
    %251 = vector.broadcast %250 : vector<8x1xf32> to vector<8x128xf32>
    %252 = arith.select %249, %251, %245 : vector<8x128xi1>, vector<8x128xf32>
    %c3_i32 = arith.constant 3 : i32
    %253 = vector.broadcast %c3_i32 : i32 to vector<1x128xi32>
    %254 = arith.cmpi eq, %11, %253 : vector<1x128xi32>
    %255 = vector.shape_cast %254 : vector<1x128xi1> to vector<1x128xi1>
    %256 = vector.broadcast %255 : vector<1x128xi1> to vector<8x128xi1>
    %257 = vector.shape_cast %209 : vector<8x1xf32> to vector<8x1xf32>
    %258 = vector.broadcast %257 : vector<8x1xf32> to vector<8x128xf32>
    %259 = arith.select %256, %258, %252 : vector<8x128xi1>, vector<8x128xf32>
    %c67_i32 = arith.constant 67 : i32
    %260 = vector.broadcast %c67_i32 : i32 to vector<1x128xi32>
    %261 = arith.cmpi eq, %11, %260 : vector<1x128xi32>
    %262 = vector.shape_cast %261 : vector<1x128xi1> to vector<1x128xi1>
    %263 = vector.broadcast %262 : vector<1x128xi1> to vector<8x128xi1>
    %264 = vector.shape_cast %201 : vector<8x1xf32> to vector<8x1xf32>
    %265 = vector.broadcast %264 : vector<8x1xf32> to vector<8x128xf32>
    %266 = arith.select %263, %265, %259 : vector<8x128xi1>, vector<8x128xf32>
    %267 = arith.index_cast %13 : i32 to index
    %c0_53 = arith.constant 0 : index
    %268 = vector.load %arg4[%267, %c0_53] : memref<8x128xf32, #tpu.memory_space<vmem>>, vector<8x128xf32>
    tpu.vector_store %arg4[%267, %c0_53], %266 {strides = array<i32>} : memref<8x128xf32, #tpu.memory_space<vmem>>, vector<8x128xf32>,
    %c1_i32_54 = arith.constant 1 : i32
    return
  }
  func.func @transform_0(%arg0: i32) -> (i32, i32) {
    %c0_i32 = arith.constant 0 : i32
    %c0_i32_0 = arith.constant 0 : i32
    return %arg0, %c0_i32 : i32, i32
  }
  func.func @transform_1(%arg0: i32) -> (i32, i32) {
    %c0_i32 = arith.constant 0 : i32
    %c0_i32_0 = arith.constant 0 : i32
    %c0_i32_1 = arith.constant 0 : i32
    return %c0_i32, %c0_i32_0 : i32, i32
  }
  func.func @transform_2(%arg0: i32) -> (i32, i32) {
    %c0_i32 = arith.constant 0 : i32
    %c0_i32_0 = arith.constant 0 : i32
    %c0_i32_1 = arith.constant 0 : i32
    return %c0_i32, %c0_i32_0 : i32, i32
  }
  func.func @transform_3(%arg0: i32) -> (i32, i32) {
    %c0_i32 = arith.constant 0 : i32
    %c0_i32_0 = arith.constant 0 : i32
    return %arg0, %c0_i32 : i32, i32
  }
}

</mosaic_0001>

<llo_original>
// kernel: tpu_custom_call.1
$region0: #{tpu_custom_call.1}
  #allocation0 [shape = 'u32[]', space=smem, size = 0x4, offset = 0x4, fixed_abs, tag = 'smem constant byte address 0x4 - core index']
  #allocation1 [shape = 'u32[144,128]{1,0:T(1,128)}', space=vmem, size = 0x12000, scoped, tag = 'internal scratch']
  #allocation2 [shape = 'f32[8,16]{1,0:T(8,128)}', space=vmem, size = 0x1000, scoped, tag = 'scratch operand']
  %s0 = inlined_call_operand.vmem [shape: bf16[16,32], index: 0, kind: input, shape index: {}]
  %s1 = inlined_call_operand.vmem [shape: bf16[32,16], index: 1, kind: input, shape index: {}]
  %s2 = inlined_call_operand.vmem [shape: f32[1,16], index: 2, kind: input, shape index: {}]
  %s3 = inlined_call_operand.hbm [shape: f32[16,128], index: 3, kind: output, shape index: {}]
  %s4 = sld [smem:[#allocation0]]
  $region45: #{tpu_custom_call.1} parent=0
    _
  %s6 = ssub.s32 1, %s4
  %s7 = scalar_select 0, %s6, %s4
  $region1: #{tpu_custom_call.1} parent=0
    #allocation3 [shape = 'u8[8192]{0}', space=vmem, size = 0x2000, scoped, tag = 'output window, operand 0']
    #allocation4 [shape = 's32[2]{0}', space=sflag, size = 0x8, scoped, tag = 'scoped memory for tpu_custom_call.1']
    %8 = vsyncpa [#allocation4], 0
    %s9 = scalar_lea.sflag [#allocation4], 1
    %10 = vsyncpa %s9, 0
    loop: start=0, step=1, limit=4
    $region2: #{tpu_custom_call.1} parent=1 // loop_pre_header
      _
    $region3: #{tpu_custom_call.1} parent=1 // loop_header
      %s12 = sphi 0, %s16
      %p13 = scmp.ge.s32.totalorder %s12, 4
      %s22 = sphi 0, %s24
      %s25 = sphi 0, %s22
      %s26 = sphi 0, %s25
      %s42 = sphi 0, %s26
      %s46 = sphi 0, %s46
      %s48 = sphi 0, %s46
      %s49 = sphi 0, %s48
      %s63 = sphi 0, %s49
      %s67 = sphi 0, %s67
      %s69 = sphi 0, %s67
      %s70 = sphi 0, %s69
      %s84 = sphi 0, %s70
      %s90 = sphi 0, %s92
      %s93 = sphi 0, %s90
      %s94 = sphi 0, %s93
      %s110 = sphi 0, %s94
    $region4: #{tpu_custom_call.1} parent=1 // loop_header_branch
      %15 = sbr.rel (%p13) target = $region8
    $region5: #{tpu_custom_call.1} parent=1 // loop_body
      %s17 = ssub.s32 %s12, 1
      %s18 = ssub.s32 %s12, 2
      %s19 = sadd.s32 %s12, 1
      %s20 = ssub.s32 %s12, %s19
      %p21 = scmp.eq.s32.totalorder %s20, 0
      %s23 = sadd.s32 %s22, 1
      %s24 = scalar_select %p21, %s22, %s23
      %p27 = pneg %p21
      %p28 = scmp.eq.s32.totalorder %s12, 1
      %p29 = por %p27, %p28
      %p30 = scmp.ne.s32.totalorder %s22, %s25
      %p31 = scmp.eq.s32.totalorder %s12, 0
      %p32 = por %p30, %p31
      %p33 = scmp.ne.s32.totalorder %s22, %s25
      %p34 = scmp.eq.s32.totalorder %s17, 1
      %p35 = por %p33, %p34
      %p36 = scmp.ne.s32.totalorder %s25, %s26
      %p37 = scmp.eq.s32.totalorder %s17, 0
      %p38 = por %p36, %p37
      %p39 = scmp.ne.s32.totalorder %s25, %s26
      %p40 = scmp.eq.s32.totalorder %s18, 1
      %p41 = por %p39, %p40
      %p43 = scmp.ne.s32.totalorder %s26, %s42
      %p44 = scmp.eq.s32.totalorder %s18, 0
      %p45 = por %p43, %p44
      %s47 = sadd.s32 %s46, 1
      %p50 = scmp.eq.s32.totalorder %s12, 1
      %p51 = scmp.ne.s32.totalorder %s46, %s48
      %p52 = scmp.eq.s32.totalorder %s12, 0
      %p53 = por %p51, %p52
      %p54 = scmp.ne.s32.totalorder %s46, %s48
      %p55 = scmp.eq.s32.totalorder %s17, 1
      %p56 = por %p54, %p55
      %p57 = scmp.ne.s32.totalorder %s48, %s49
      %p58 = scmp.eq.s32.totalorder %s17, 0
      %p59 = por %p57, %p58
      %p60 = scmp.ne.s32.totalorder %s48, %s49
      %p61 = scmp.eq.s32.totalorder %s18, 1
      %p62 = por %p60, %p61
      %p64 = scmp.ne.s32.totalorder %s49, %s63
      %p65 = scmp.eq.s32.totalorder %s18, 0
      %p66 = por %p64, %p65
      %s68 = sadd.s32 %s67, 1
      %p71 = scmp.eq.s32.totalorder %s12, 1
      %p72 = scmp.ne.s32.totalorder %s67, %s69
      %p73 = scmp.eq.s32.totalorder %s12, 0
      %p74 = por %p72, %p73
      %p75 = scmp.ne.s32.totalorder %s67, %s69
      %p76 = scmp.eq.s32.totalorder %s17, 1
      %p77 = por %p75, %p76
      %p78 = scmp.ne.s32.totalorder %s69, %s70
      %p79 = scmp.eq.s32.totalorder %s17, 0
      %p80 = por %p78, %p79
      %p81 = scmp.ne.s32.totalorder %s69, %s70
      %p82 = scmp.eq.s32.totalorder %s18, 1
      %p83 = por %p81, %p82
      %p85 = scmp.ne.s32.totalorder %s70, %s84
      %p86 = scmp.eq.s32.totalorder %s18, 0
      %p87 = por %p85, %p86
      %s88 = ssub.s32 %s12, %s19
      %p89 = scmp.eq.s32.totalorder %s88, 0
      %s91 = sadd.s32 %s90, 1
      %s92 = scalar_select %p89, %s90, %s91
      %p95 = pneg %p89
      %p96 = scmp.eq.s32.totalorder %s12, 1
      %p97 = por %p95, %p96
      %p98 = scmp.ne.s32.totalorder %s90, %s93
      %p99 = scmp.eq.s32.totalorder %s12, 0
      %p100 = por %p98, %p99
      %p101 = scmp.ne.s32.totalorder %s90, %s93
      %p102 = scmp.eq.s32.totalorder %s17, 1
      %p103 = por %p101, %p102
      %p104 = scmp.ne.s32.totalorder %s93, %s94
      %p105 = scmp.eq.s32.totalorder %s17, 0
      %p106 = por %p104, %p105
      %p107 = scmp.ne.s32.totalorder %s93, %s94
      %p108 = scmp.eq.s32.totalorder %s18, 1
      %p109 = por %p107, %p108
      %p111 = scmp.ne.s32.totalorder %s94, %s110
      %p112 = scmp.eq.s32.totalorder %s18, 0
      %p113 = por %p111, %p112
      %p114 = scmp.le.s32.totalorder 1, %s12
      %p115 = scmp.lt.s32.totalorder %s12, 3
      %p116 = pnand %p114, %p115
      %p117 = pneg %p116
      // Predicated region
      $region9: #{tpu_custom_call.1} parent=5 // pred_check
        _
      $region10: #{tpu_custom_call.1} parent=5 // pred_check_branch
        %119 = sbr.rel (%p116) target = $region12
      $region11: #{tpu_custom_call.1} parent=5 // pred_region
        %s120 = ssub.s32 %s12, 1
        // Predicated region
        $region13: #{tpu_custom_call.1} parent=11 // pred_check
          %p121 = pneg %p59
        $region14: #{tpu_custom_call.1} parent=11 // pred_check_branch
          %123 = sbr.rel (%p121) target = $region16
        $region15: #{tpu_custom_call.1} parent=11 // pred_region
          _
        $region16: #{tpu_custom_call.1} parent=11 // pred_fallthru
          _
        // Predicated region
        $region17: #{tpu_custom_call.1} parent=11 // pred_check
          %p124 = pneg %p80
        $region18: #{tpu_custom_call.1} parent=11 // pred_check_branch
          %126 = sbr.rel (%p124) target = $region20
        $region19: #{tpu_custom_call.1} parent=11 // pred_region
          _
        $region20: #{tpu_custom_call.1} parent=11 // pred_fallthru
          _
      $region12: #{tpu_custom_call.1} parent=5 // pred_fallthru
        _
      %p127 = scmp.lt.s32.totalorder %s12, 2
      // Predicated region
      $region21: #{tpu_custom_call.1} parent=5 // pred_check
        %p128 = pneg %p127
      $region22: #{tpu_custom_call.1} parent=5 // pred_check_branch
        %130 = sbr.rel (%p128) target = $region24
      $region23: #{tpu_custom_call.1} parent=5 // pred_region
        // Predicated region
        $region25: #{tpu_custom_call.1} parent=23 // pred_check
          %p131 = pneg %p32
        $region26: #{tpu_custom_call.1} parent=23 // pred_check_branch
          %133 = sbr.rel (%p131) target = $region28
        $region27: #{tpu_custom_call.1} parent=23 // pred_region
          %p134 = scmp.lt.s32.totalorder %s12, 1
          %s135 = scalar_select %p134, %s12, 1
          %s136 = smul.addr %s135, 4
          %s137 = scalar_lea.vmem %s0, %s136
        $region28: #{tpu_custom_call.1} parent=23 // pred_fallthru
          _
      $region24: #{tpu_custom_call.1} parent=5 // pred_fallthru
        _
      %p138 = scmp.le.s32.totalorder 1, %s12
      %p139 = scmp.lt.s32.totalorder %s12, 3
      %p140 = pnand %p138, %p139
      %p141 = pneg %p140
      // Predicated region
      $region29: #{tpu_custom_call.1} parent=5 // pred_check
        _
      $region30: #{tpu_custom_call.1} parent=5 // pred_check_branch
        %143 = sbr.rel (%p140) target = $region32
      $region31: #{tpu_custom_call.1} parent=5 // pred_region
        %s144 = ssub.s32 %s12, 1
        %p145 = scmp.lt.s32.totalorder %s17, 1
        %s146 = scalar_select %p145, %s17, 1
        %s147 = smul.addr %s146, 4
        %s148 = scalar_lea.vmem %s0, %s147
        %p149 = pneg %p38
        %p150 = pneg %p35
        %p151 = pneg %p59
        %p152 = pneg %p56
        %p153 = pneg %p80
        %p154 = pneg %p77
        %p155 = pneg %p106
        %p156 = pneg %p103
        %s157 = sand.u32 %s93, 1
        %s158 = scalar_lea.sflag [#allocation4], %s157
        %s159 = sand.u32 %s93, 1
        %s160 = smul.addr %s159, 8
        %s161 = scalar_lea.vmem [#allocation3], %s160
        %p162 = scmp.lt.s32.totalorder %s17, 1
        %s163 = scalar_select %p162, %s17, 1
        %s164 = smul.addr %s163, 4
        %s165 = scalar_lea.vmem %s0, %s164
        %v167 = vld [vmem:[%s165] sm:$0xf]
        %v168 = vld [vmem:[%s1] sm:$0xf]
        %v169 = vld [vmem:[%s1 + $0x4] sm:$0xf]
        %v170 = vld [vmem:[%s1 + $0x8] sm:$0xf]
        %v171 = vld [vmem:[%s1 + $0xc] sm:$0xf]
        %v176 = vunpack.c.l.b16 %v168
        %v177 = vunpack.c.l.b16 %v169
        %v178 = vunpack.c.l.b16 %v170
        %v179 = vunpack.c.l.b16 %v171
        %v180 = vpack.c.b16 %v177, %v176
        %v181 = vpack.c.b16 %v179, %v178
        %vm184 = vcmask 261120
        %v186 = vsel %vm184, %v167, 0
        %188 = vmatprep.subr.bf16.mxu0 0
        %189 = vmatpush1.bf16.msra.mxu0 %v180
        %190 = vmatprep.subr.bf16.mxu0 0
        %191 = vmatpush1.bf16.msra.mxu0 %v181
        %192 = vmatprep.subr.bf16.mxu0 0
        %193 = vmatpush1.bf16.msra.mxu0 0
        %194 = vmatprep.subr.bf16.mxu0 0
        %195 = vmatpush1.bf16.msra.mxu0 0
        %196 = vmatprep.subr.bf16.mxu0 0
        %197 = vmatpush1.bf16.msra.mxu0 0
        %198 = vmatprep.subr.bf16.mxu0 0
        %199 = vmatpush1.bf16.msra.mxu0 0
        %200 = vmatprep.subr.bf16.mxu0 0
        %201 = vmatpush1.bf16.msra.mxu0 0
        %202 = vmatprep.subr.bf16.mxu0 0
        %203 = vmatpush1.bf16.msra.mxu0 0
        %204 = vmatprep.subr.bf16.mxu0 0
        %205 = vmatpush1.bf16.msra.mxu0 0
        %206 = vmatprep.subr.bf16.mxu0 0
        %207 = vmatpush1.bf16.msra.mxu0 0
        %208 = vmatprep.subr.bf16.mxu0 0
        %209 = vmatpush1.bf16.msra.mxu0 0
        %210 = vmatprep.subr.bf16.mxu0 0
        %211 = vmatpush1.bf16.msra.mxu0 0
        %212 = vmatprep.subr.bf16.mxu0 0
        %213 = vmatpush1.bf16.msra.mxu0 0
        %214 = vmatprep.subr.bf16.mxu0 0
        %215 = vmatpush1.bf16.msra.mxu0 0
        %216 = vmatprep.subr.bf16.mxu0 0
        %217 = vmatpush1.bf16.msra.mxu0 0
        %218 = vmatprep.subr.bf16.mxu0 0
        %219 = vmatpush1.bf16.msra.mxu0 0
        %220 = vmatprep.mubr.bf16.mxu0 0
        %221 = vmatmul.mubr.bf16.gmra.mrb[0].mxu0 %v186
        %v222 = vpop.f32.mrb[0].mxu0
        %v223 = vadd.f32 0.0, %v222
        %v224 = vpop.f32.mrb[0].mxu0
        %v225 = vpop.f32.mrb[0].mxu0
        %v226 = vpop.f32.mrb[0].mxu0
        %227 = vdwg.mxu0
        %v228 = vxor.u32 %v223, 2147483648
        %v229 = vmul.f32 %v228, 1.442695
        %v230 = vpow.pop %v229
        %v231 = vadd.f32 %v230, 1.0
        %v232 = vrcp.pop %v231
        %v233 = vmul.f32 1.0, %v232
        %vm234 = vcmask 130048
        %235 = vst.msk [vmem:[#allocation2] sm:$0xff] %vm234, %v233
        %v236 = vld [vmem:[%s2] sm:$0x1]
        %v237 = vlaneseq
        %v238 = vand.u32 %v237, 127
        %v239 = vld [vmem:[#allocation2] sm:$0xff]
        %v241 = vlaneseq
        %v242 = vshrl.u32 %v241, 7
        %v243 = vsub.s32 0, %v242
        %v244 = vrot.slane %v236, %v243
        %v246 = vadd.f32 %v239, %v244
        %vm247 = vcmp.ge.s32.totalorder %v238, 0
        %vm248 = vcmp.lt.s32.totalorder %v238, 4
        %vm249 = vmand %vm247, %vm248
        %v250 = vsel %vm249, 1, 0
        %vm251 = vcmp.eq.s32.totalorder %v250, 1
        %v252 = vsel %vm251, %v246, -1e+30
        %v253 = vsel %vm234, %v252, -inf
        %254 = vmax.xlane.f32.xlu0 %v253
        %v255 = vpop.xlane.xlu0 %254
        %vm256 = vcmp.eq.f32.partialorder %v252, %v255
        %v257 = vsel %vm256, -1e+30, %v252
        %v258 = vsel %vm234, %v257, -inf
        %259 = vmax.xlane.f32.xlu0 %v258
        %v260 = vpop.xlane.xlu0 %259
        %v261 = vadd.f32 %v255, %v260
        %v262 = vsel %vm251, %v261, 0.0
        %vm263 = vcmp.ge.s32.totalorder %v238, 4
        %vm264 = vcmp.lt.s32.totalorder %v238, 8
        %vm265 = vmand %vm263, %vm264
        %v266 = vsel %vm265, 1, 0
        %vm267 = vcmp.eq.s32.totalorder %v266, 1
        %v268 = vsel %vm267, %v246, -1e+30
        %v269 = vsel %vm234, %v268, -inf
        %270 = vmax.xlane.f32.xlu0 %v269
        %v271 = vpop.xlane.xlu0 %270
        %vm272 = vcmp.eq.f32.partialorder %v268, %v271
        %v273 = vsel %vm272, -1e+30, %v268
        %v274 = vsel %vm234, %v273, -inf
        %275 = vmax.xlane.f32.xlu0 %v274
        %v276 = vpop.xlane.xlu0 %275
        %v277 = vadd.f32 %v271, %v276
        %v278 = vsel %vm267, %v277, %v262
        %vm279 = vcmp.ge.s32.totalorder %v238, 8
        %vm280 = vcmp.lt.s32.totalorder %v238, 12
        %vm281 = vmand %vm279, %vm280
        %v282 = vsel %vm281, 1, 0
        %vm283 = vcmp.eq.s32.totalorder %v282, 1
        %v284 = vsel %vm283, %v246, -1e+30
        %v285 = vsel %vm234, %v284, -inf
        %286 = vmax.xlane.f32.xlu0 %v285
        %v287 = vpop.xlane.xlu0 %286
        %vm288 = vcmp.eq.f32.partialorder %v284, %v287
        %v289 = vsel %vm288, -1e+30, %v284
        %v290 = vsel %vm234, %v289, -inf
        %291 = vmax.xlane.f32.xlu0 %v290
        %v292 = vpop.xlane.xlu0 %291
        %v293 = vadd.f32 %v287, %v292
        %v294 = vsel %vm283, %v293, %v278
        %vm295 = vcmp.ge.s32.totalorder %v238, 12
        %vm296 = vcmp.lt.s32.totalorder %v238, 16
        %vm297 = vmand %vm295, %vm296
        %v298 = vsel %vm297, 1, 0
        %vm299 = vcmp.eq.s32.totalorder %v298, 1
        %v300 = vsel %vm299, %v246, -1e+30
        %v301 = vsel %vm234, %v300, -inf
        %302 = vmax.xlane.f32.xlu0 %v301
        %v303 = vpop.xlane.xlu0 %302
        %vm304 = vcmp.eq.f32.partialorder %v300, %v303
        %v305 = vsel %vm304, -1e+30, %v300
        %v306 = vsel %vm234, %v305, -inf
        %307 = vmax.xlane.f32.xlu0 %v306
        %v308 = vpop.xlane.xlu0 %307
        %v309 = vadd.f32 %v303, %v308
        %v310 = vsel %vm299, %v309, %v294
        %v311 = vsel %vm234, %v310, -inf
        %312 = vmax.xlane.f32.xlu0 %v311
        %v313 = vpop.xlane.xlu0 %312
        %vm314 = vcmp.eq.f32.partialorder %v310, %v313
        %v315 = vsel %vm314, %v246, 0.0
        %v316 = vsel %vm314, -1e+30, %v310
        %v317 = vsel %vm234, %v316, -inf
        %318 = vmax.xlane.f32.xlu0 %v317
        %v319 = vpop.xlane.xlu0 %318
        %vm320 = vcmp.eq.f32.partialorder %v316, %v319
        %v321 = vsel %vm320, %v246, %v315
        %v322 = vsel %vm234, %v321, -inf
        %323 = vmax.xlane.f32.xlu0 %v322
        %v324 = vpop.xlane.xlu0 %323
        %vm325 = vcmp.eq.f32.partialorder %v321, %v324
        %v326 = vsel %vm325, %v238, 16
        %v327 = vsel %vm234, %v326, 2147483647
        %v328 = vand.u32 %v327, 65535
        %v329 = vshra.s32 %v327, 16
        %v330 = vcvt.s32.f32 %v328
        %v331 = vcvt.s32.f32 %v329
        %332 = vmin.xlane.f32.xlu0 %v331
        %v333 = vpop.xlane.xlu0 %332
        %vm334 = vcmp.eq.f32.partialorder %v331, %v333
        %v335 = vsel %vm334, %v330, inf
        %336 = vmin.xlane.f32.xlu0 %v335
        %v337 = vpop.xlane.xlu0 %336
        %v338 = vcvt.f32.s32 %v337
        %v339 = vcvt.f32.s32 %v333
        %v340 = vshll.u32 %v339, 16
        %v341 = vadd.s32 %v340, %v338
        %vm342 = vcmp.eq.s32.totalorder %v238, %v341
        %v343 = vsel %vm342, %v239, 0.0
        %v344 = vsel %vm234, %v343, 0.0
        %345 = vadd.xlane.f32.xlu0 %v344
        %v346 = vpop.xlane.xlu0 %345
        %v347 = vcvt.s32.f32 %v341
        %v348 = vsel %vm342, -1e+30, %v321
        %v349 = vsel %vm234, %v348, -inf
        %350 = vmax.xlane.f32.xlu0 %v349
        %v351 = vpop.xlane.xlu0 %350
        %vm352 = vcmp.eq.f32.partialorder %v348, %v351
        %v353 = vsel %vm352, %v238, 16
        %v354 = vsel %vm234, %v353, 2147483647
        %v355 = vand.u32 %v354, 65535
        %v356 = vshra.s32 %v354, 16
        %v357 = vcvt.s32.f32 %v355
        %v358 = vcvt.s32.f32 %v356
        %359 = vmin.xlane.f32.xlu0 %v358
        %v360 = vpop.xlane.xlu0 %359
        %vm361 = vcmp.eq.f32.partialorder %v358, %v360
        %v362 = vsel %vm361, %v357, inf
        %363 = vmin.xlane.f32.xlu0 %v362
        %v364 = vpop.xlane.xlu0 %363
        %v365 = vcvt.f32.s32 %v364
        %v366 = vcvt.f32.s32 %v360
        %v367 = vshll.u32 %v366, 16
        %v368 = vadd.s32 %v367, %v365
        %vm369 = vcmp.eq.s32.totalorder %v238, %v368
        %v370 = vsel %vm369, %v239, 0.0
        %v371 = vsel %vm234, %v370, 0.0
        %372 = vadd.xlane.f32.xlu0 %v371
        %v373 = vpop.xlane.xlu0 %372
        %v374 = vcvt.s32.f32 %v368
        %v375 = vsel %vm369, -1e+30, %v348
        %v376 = vsel %vm234, %v375, -inf
        %377 = vmax.xlane.f32.xlu0 %v376
        %v378 = vpop.xlane.xlu0 %377
        %vm379 = vcmp.eq.f32.partialorder %v375, %v378
        %v380 = vsel %vm379, %v238, 16
        %v381 = vsel %vm234, %v380, 2147483647
        %v382 = vand.u32 %v381, 65535
        %v383 = vshra.s32 %v381, 16
        %v384 = vcvt.s32.f32 %v382
        %v385 = vcvt.s32.f32 %v383
        %386 = vmin.xlane.f32.xlu0 %v385
        %v387 = vpop.xlane.xlu0 %386
        %vm388 = vcmp.eq.f32.partialorder %v385, %v387
        %v389 = vsel %vm388, %v384, inf
        %390 = vmin.xlane.f32.xlu0 %v389
        %v391 = vpop.xlane.xlu0 %390
        %v392 = vcvt.f32.s32 %v391
        %v393 = vcvt.f32.s32 %v387
        %v394 = vshll.u32 %v393, 16
        %v395 = vadd.s32 %v394, %v392
        %vm396 = vcmp.eq.s32.totalorder %v238, %v395
        %v397 = vsel %vm396, %v239, 0.0
        %v398 = vsel %vm234, %v397, 0.0
        %399 = vadd.xlane.f32.xlu0 %v398
        %v400 = vpop.xlane.xlu0 %399
        %v401 = vcvt.s32.f32 %v395
        %v402 = vsel %vm396, -1e+30, %v375
        %v403 = vsel %vm234, %v402, -inf
        %404 = vmax.xlane.f32.xlu0 %v403
        %v405 = vpop.xlane.xlu0 %404
        %vm406 = vcmp.eq.f32.partialorder %v402, %v405
        %v407 = vsel %vm406, %v238, 16
        %v408 = vsel %vm234, %v407, 2147483647
        %v409 = vand.u32 %v408, 65535
        %v410 = vshra.s32 %v408, 16
        %v411 = vcvt.s32.f32 %v409
        %v412 = vcvt.s32.f32 %v410
        %413 = vmin.xlane.f32.xlu0 %v412
        %v414 = vpop.xlane.xlu0 %413
        %vm415 = vcmp.eq.f32.partialorder %v412, %v414
        %v416 = vsel %vm415, %v411, inf
        %417 = vmin.xlane.f32.xlu0 %v416
        %v418 = vpop.xlane.xlu0 %417
        %v419 = vcvt.f32.s32 %v418
        %v420 = vcvt.f32.s32 %v414
        %v421 = vshll.u32 %v420, 16
        %v422 = vadd.s32 %v421, %v419
        %vm423 = vcmp.eq.s32.totalorder %v238, %v422
        %v424 = vsel %vm423, %v239, 0.0
        %v425 = vsel %vm234, %v424, 0.0
        %426 = vadd.xlane.f32.xlu0 %v425
        %v427 = vpop.xlane.xlu0 %426
        %v428 = vcvt.s32.f32 %v422
        %v429 = vmul.f32 %v346, 2.5
        %v430 = vmul.f32 %v373, 2.5
        %v431 = vmul.f32 %v400, 2.5
        %v432 = vmul.f32 %v427, 2.5
        %vm433 = vcmp.eq.s32.totalorder %v238, 0
        %v434 = vsel %vm433, 1, 0
        %vm435 = vcmp.eq.s32.totalorder %v434, 1
        %v436 = vsel %vm435, %v429, 0.0
        %vm437 = vcmp.eq.s32.totalorder %v238, 64
        %v438 = vsel %vm437, 1, 0
        %vm439 = vcmp.eq.s32.totalorder %v438, 1
        %v440 = vsel %vm439, %v347, %v436
        %vm441 = vcmp.eq.s32.totalorder %v238, 1
        %v442 = vsel %vm441, 1, 0
        %vm443 = vcmp.eq.s32.totalorder %v442, 1
        %v444 = vsel %vm443, %v430, %v440
        %vm445 = vcmp.eq.s32.totalorder %v238, 65
        %v446 = vsel %vm445, 1, 0
        %vm447 = vcmp.eq.s32.totalorder %v446, 1
        %v448 = vsel %vm447, %v374, %v444
        %vm449 = vcmp.eq.s32.totalorder %v238, 2
        %v450 = vsel %vm449, 1, 0
        %vm451 = vcmp.eq.s32.totalorder %v450, 1
        %v452 = vsel %vm451, %v431, %v448
        %vm453 = vcmp.eq.s32.totalorder %v238, 66
        %v454 = vsel %vm453, 1, 0
        %vm455 = vcmp.eq.s32.totalorder %v454, 1
        %v456 = vsel %vm455, %v401, %v452
        %vm457 = vcmp.eq.s32.totalorder %v238, 3
        %v458 = vsel %vm457, 1, 0
        %vm459 = vcmp.eq.s32.totalorder %v458, 1
        %v460 = vsel %vm459, %v432, %v456
        %vm461 = vcmp.eq.s32.totalorder %v238, 67
        %v462 = vsel %vm461, 1, 0
        %vm463 = vcmp.eq.s32.totalorder %v462, 1
        %v464 = vsel %vm463, %v428, %v460
        %465 = vst [vmem:[%s161] sm:$0xff] %v464
        %s466 = sand.u32 %s93, 1
        %s467 = scalar_lea.sflag [#allocation4], %s466
        %s468 = sand.u32 %s93, 1
        %s469 = smul.addr %s468, 8
        %s470 = scalar_lea.vmem [#allocation3], %s469
        // Predicated region
        $region33: #{tpu_custom_call.1} parent=31 // pred_check
          %p471 = pneg %p103
        $region34: #{tpu_custom_call.1} parent=31 // pred_check_branch
          %473 = sbr.rel (%p471) target = $region36
        $region35: #{tpu_custom_call.1} parent=31 // pred_region
          %s475 = ssub.s32 128, 128
          %476 = vsyncadd %s467, %s475
          %s477 = smul.addr %s17, 128
          %s478 = scalar_lea.hbm %s3, %s477
          %s480 = sshll.u32 %s470, 4
          %s481 = int_to_ptr.vmem [resolvable:$true] %s480
          %483 = dma.vmem_to_hbm [thread:$0]  %s481, 128, %s478, %s467
        $region36: #{tpu_custom_call.1} parent=31 // pred_fallthru
          _
      $region32: #{tpu_custom_call.1} parent=5 // pred_fallthru
        _
      %p484 = scmp.le.s32.totalorder 2, %s12
      // Predicated region
      $region37: #{tpu_custom_call.1} parent=5 // pred_check
        %p485 = pneg %p484
      $region38: #{tpu_custom_call.1} parent=5 // pred_check_branch
        %487 = sbr.rel (%p485) target = $region40
      $region39: #{tpu_custom_call.1} parent=5 // pred_region
        %s488 = ssub.s32 %s12, 2
        // Predicated region
        $region41: #{tpu_custom_call.1} parent=39 // pred_check
          %p489 = pneg %p109
        $region42: #{tpu_custom_call.1} parent=39 // pred_check_branch
          %491 = sbr.rel (%p489) target = $region44
        $region43: #{tpu_custom_call.1} parent=39 // pred_region
          %s492 = sand.u32 %s94, 1
          %s493 = scalar_lea.sflag [#allocation4], %s492
          %s494 = sand.u32 %s94, 1
          %s495 = smul.addr %s494, 8
          %s496 = scalar_lea.vmem [#allocation3], %s495
          %497 = dma.done %s493, 128
        $region44: #{tpu_custom_call.1} parent=39 // pred_fallthru
          _
      $region40: #{tpu_custom_call.1} parent=5 // pred_fallthru
        _
    $region6: #{tpu_custom_call.1} parent=1 // loop_footer
      %s16 = sadd.s32 1, %s12
    $region7: #{tpu_custom_call.1} parent=1 // loop_footer_branch
      %11 = sbr.rel target = $region3
    $region8: #{tpu_custom_call.1} parent=1 // loop_exit
      _
    %498 = vsyncpa [#allocation4], 1
    %s499 = scalar_lea.sflag [#allocation4], 1
    %500 = vsyncpa %s499, 1

// kernel: tpu_custom_call.1
$region0: #{tpu_custom_call.1}
  #allocation0 [shape = 'u32[]', space=smem, size = 0x4, offset = 0x4, fixed_abs, tag = 'smem constant byte address 0x4 - core index']
  #allocation1 [shape = 'u32[144,128]{1,0:T(1,128)}', space=vmem, size = 0x12000, scoped, tag = 'internal scratch']
  #allocation2 [shape = 'f32[8,16]{1,0:T(8,128)}', space=vmem, size = 0x1000, scoped, tag = 'scratch operand']
  %s0 = inlined_call_operand.vmem [shape: bf16[16,32], index: 0, kind: input, shape index: {}]
  %s1 = inlined_call_operand.vmem [shape: bf16[32,16], index: 1, kind: input, shape index: {}]
  %s2 = inlined_call_operand.vmem [shape: f32[1,16], index: 2, kind: input, shape index: {}]
  %s3 = inlined_call_operand.hbm [shape: f32[16,128], index: 3, kind: output, shape index: {}]
  %s4 = sld [smem:[#allocation0]]
  $region45: #{tpu_custom_call.1} parent=0
    _
  %s6 = ssub.s32 1, %s4
  %s7 = scalar_select 0, %s6, %s4
  $region1: #{tpu_custom_call.1} parent=0
    #allocation3 [shape = 'u8[8192]{0}', space=vmem, size = 0x2000, scoped, tag = 'output window, operand 0']
    #allocation4 [shape = 's32[2]{0}', space=sflag, size = 0x8, scoped, tag = 'scoped memory for tpu_custom_call.1']
    %8 = vsyncpa [#allocation4], 0
    %s9 = scalar_lea.sflag [#allocation4], 1
    %10 = vsyncpa %s9, 0
    loop: start=0, step=1, limit=4
    $region2: #{tpu_custom_call.1} parent=1 // loop_pre_header
      _
    $region3: #{tpu_custom_call.1} parent=1 // loop_header
      %s12 = sphi 0, %s16
      %p13 = scmp.ge.s32.totalorder %s12, 4
      %s22 = sphi 0, %s24
      %s25 = sphi 0, %s22
      %s26 = sphi 0, %s25
      %s42 = sphi 0, %s26
      %s46 = sphi 0, %s46
      %s48 = sphi 0, %s46
      %s49 = sphi 0, %s48
      %s63 = sphi 0, %s49
      %s67 = sphi 0, %s67
      %s69 = sphi 0, %s67
      %s70 = sphi 0, %s69
      %s84 = sphi 0, %s70
      %s90 = sphi 0, %s92
      %s93 = sphi 0, %s90
      %s94 = sphi 0, %s93
      %s110 = sphi 0, %s94
    $region4: #{tpu_custom_call.1} parent=1 // loop_header_branch
      %15 = sbr.rel (%p13) target = $region8
    $region5: #{tpu_custom_call.1} parent=1 // loop_body
      %s17 = ssub.s32 %s12, 1
      %s18 = ssub.s32 %s12, 2
      %s19 = sadd.s32 %s12, 1
      %s20 = ssub.s32 %s12, %s19
      %p21 = scmp.eq.s32.totalorder %s20, 0
      %s23 = sadd.s32 %s22, 1
      %s24 = scalar_select %p21, %s22, %s23
      %p27 = pneg %p21
      %p28 = scmp.eq.s32.totalorder %s12, 1
      %p29 = por %p27, %p28
      %p30 = scmp.ne.s32.totalorder %s22, %s25
      %p31 = scmp.eq.s32.totalorder %s12, 0
      %p32 = por %p30, %p31
      %p33 = scmp.ne.s32.totalorder %s22, %s25
      %p34 = scmp.eq.s32.totalorder %s17, 1
      %p35 = por %p33, %p34
      %p36 = scmp.ne.s32.totalorder %s25, %s26
      %p37 = scmp.eq.s32.totalorder %s17, 0
      %p38 = por %p36, %p37
      %p39 = scmp.ne.s32.totalorder %s25, %s26
      %p40 = scmp.eq.s32.totalorder %s18, 1
      %p41 = por %p39, %p40
      %p43 = scmp.ne.s32.totalorder %s26, %s42
      %p44 = scmp.eq.s32.totalorder %s18, 0
      %p45 = por %p43, %p44
      %s47 = sadd.s32 %s46, 1
      %p50 = scmp.eq.s32.totalorder %s12, 1
      %p51 = scmp.ne.s32.totalorder %s46, %s48
      %p52 = scmp.eq.s32.totalorder %s12, 0
      %p53 = por %p51, %p52
      %p54 = scmp.ne.s32.totalorder %s46, %s48
      %p55 = scmp.eq.s32.totalorder %s17, 1
      %p56 = por %p54, %p55
      %p57 = scmp.ne.s32.totalorder %s48, %s49
      %p58 = scmp.eq.s32.totalorder %s17, 0
      %p59 = por %p57, %p58
      %p60 = scmp.ne.s32.totalorder %s48, %s49
      %p61 = scmp.eq.s32.totalorder %s18, 1
      %p62 = por %p60, %p61
      %p64 = scmp.ne.s32.totalorder %s49, %s63
      %p65 = scmp.eq.s32.totalorder %s18, 0
      %p66 = por %p64, %p65
      %s68 = sadd.s32 %s67, 1
      %p71 = scmp.eq.s32.totalorder %s12, 1
      %p72 = scmp.ne.s32.totalorder %s67, %s69
      %p73 = scmp.eq.s32.totalorder %s12, 0
      %p74 = por %p72, %p73
      %p75 = scmp.ne.s32.totalorder %s67, %s69
      %p76 = scmp.eq.s32.totalorder %s17, 1
      %p77 = por %p75, %p76
      %p78 = scmp.ne.s32.totalorder %s69, %s70
      %p79 = scmp.eq.s32.totalorder %s17, 0
      %p80 = por %p78, %p79
      %p81 = scmp.ne.s32.totalorder %s69, %s70
      %p82 = scmp.eq.s32.totalorder %s18, 1
      %p83 = por %p81, %p82
      %p85 = scmp.ne.s32.totalorder %s70, %s84
      %p86 = scmp.eq.s32.totalorder %s18, 0
      %p87 = por %p85, %p86
      %s88 = ssub.s32 %s12, %s19
      %p89 = scmp.eq.s32.totalorder %s88, 0
      %s91 = sadd.s32 %s90, 1
      %s92 = scalar_select %p89, %s90, %s91
      %p95 = pneg %p89
      %p96 = scmp.eq.s32.totalorder %s12, 1
      %p97 = por %p95, %p96
      %p98 = scmp.ne.s32.totalorder %s90, %s93
      %p99 = scmp.eq.s32.totalorder %s12, 0
      %p100 = por %p98, %p99
      %p101 = scmp.ne.s32.totalorder %s90, %s93
      %p102 = scmp.eq.s32.totalorder %s17, 1
      %p103 = por %p101, %p102
      %p104 = scmp.ne.s32.totalorder %s93, %s94
      %p105 = scmp.eq.s32.totalorder %s17, 0
      %p106 = por %p104, %p105
      %p107 = scmp.ne.s32.totalorder %s93, %s94
      %p108 = scmp.eq.s32.totalorder %s18, 1
      %p109 = por %p107, %p108
      %p111 = scmp.ne.s32.totalorder %s94, %s110
      %p112 = scmp.eq.s32.totalorder %s18, 0
      %p113 = por %p111, %p112
      %p114 = scmp.le.s32.totalorder 1, %s12
      %p115 = scmp.lt.s32.totalorder %s12, 3
      %p116 = pnand %p114, %p115
      %p117 = pneg %p116
      // Predicated region
      $region9: #{tpu_custom_call.1} parent=5 // pred_check
        _
      $region10: #{tpu_custom_call.1} parent=5 // pred_check_branch
        %119 = sbr.rel (%p116) target = $region12
      $region11: #{tpu_custom_call.1} parent=5 // pred_region
        %s120 = ssub.s32 %s12, 1
        // Predicated region
        $region13: #{tpu_custom_call.1} parent=11 // pred_check
          %p121 = pneg %p59
        $region14: #{tpu_custom_call.1} parent=11 // pred_check_branch
          %123 = sbr.rel (%p121) target = $region16
        $region15: #{tpu_custom_call.1} parent=11 // pred_region
          _
        $region16: #{tpu_custom_call.1} parent=11 // pred_fallthru
          _
        // Predicated region
        $region17: #{tpu_custom_call.1} parent=11 // pred_check
          %p124 = pneg %p80
        $region18: #{tpu_custom_call.1} parent=11 // pred_check_branch
          %126 = sbr.rel (%p124) target = $region20
        $region19: #{tpu_custom_call.1} parent=11 // pred_region
          _
        $region20: #{tpu_custom_call.1} parent=11 // pred_fallthru
          _
      $region12: #{tpu_custom_call.1} parent=5 // pred_fallthru
        _
      %p127 = scmp.lt.s32.totalorder %s12, 2
      // Predicated region
      $region21: #{tpu_custom_call.1} parent=5 // pred_check
        %p128 = pneg %p127
      $region22: #{tpu_custom_call.1} parent=5 // pred_check_branch
        %130 = sbr.rel (%p128) target = $region24
      $region23: #{tpu_custom_call.1} parent=5 // pred_region
        // Predicated region
        $region25: #{tpu_custom_call.1} parent=23 // pred_check
          %p131 = pneg %p32
        $region26: #{tpu_custom_call.1} parent=23 // pred_check_branch
          %133 = sbr.rel (%p131) target = $region28
        $region27: #{tpu_custom_call.1} parent=23 // pred_region
          %p134 = scmp.lt.s32.totalorder %s12, 1
          %s135 = scalar_select %p134, %s12, 1
          %s136 = smul.addr %s135, 4
          %s137 = scalar_lea.vmem %s0, %s136
        $region28: #{tpu_custom_call.1} parent=23 // pred_fallthru
          _
      $region24: #{tpu_custom_call.1} parent=5 // pred_fallthru
        _
      %p138 = scmp.le.s32.totalorder 1, %s12
      %p139 = scmp.lt.s32.totalorder %s12, 3
      %p140 = pnand %p138, %p139
      %p141 = pneg %p140
      // Predicated region
      $region29: #{tpu_custom_call.1} parent=5 // pred_check
        _
      $region30: #{tpu_custom_call.1} parent=5 // pred_check_branch
        %143 = sbr.rel (%p140) target = $region32
      $region31: #{tpu_custom_call.1} parent=5 // pred_region
        %s144 = ssub.s32 %s12, 1
        %p145 = scmp.lt.s32.totalorder %s17, 1
        %s146 = scalar_select %p145, %s17, 1
        %s147 = smul.addr %s146, 4
        %s148 = scalar_lea.vmem %s0, %s147
        %p149 = pneg %p38
        %p150 = pneg %p35
        %p151 = pneg %p59
        %p152 = pneg %p56
        %p153 = pneg %p80
        %p154 = pneg %p77
        %p155 = pneg %p106
        %p156 = pneg %p103
        %s157 = sand.u32 %s93, 1
        %s158 = scalar_lea.sflag [#allocation4], %s157
        %s159 = sand.u32 %s93, 1
        %s160 = smul.addr %s159, 8
        %s161 = scalar_lea.vmem [#allocation3], %s160
        %p162 = scmp.lt.s32.totalorder %s17, 1
        %s163 = scalar_select %p162, %s17, 1
        %s164 = smul.addr %s163, 4
        %s165 = scalar_lea.vmem %s0, %s164
        %v167 = vld [vmem:[%s165] sm:$0xf]
        %v168 = vld [vmem:[%s1] sm:$0xf]
        %v169 = vld [vmem:[%s1 + $0x4] sm:$0xf]
        %v170 = vld [vmem:[%s1 + $0x8] sm:$0xf]
        %v171 = vld [vmem:[%s1 + $0xc] sm:$0xf]
        %v176 = vunpack.c.l.b16 %v168
        %v177 = vunpack.c.l.b16 %v169
        %v178 = vunpack.c.l.b16 %v170
        %v179 = vunpack.c.l.b16 %v171
        %v180 = vpack.c.b16 %v177, %v176
        %v181 = vpack.c.b16 %v179, %v178
        %vm184 = vcmask 261120
        %v186 = vsel %vm184, %v167, 0
        %188 = vmatprep.subr.bf16.mxu0 0
        %189 = vmatpush1.bf16.msra.mxu0 %v180
        %190 = vmatprep.subr.bf16.mxu0 0
        %191 = vmatpush1.bf16.msra.mxu0 %v181
        %192 = vmatprep.subr.bf16.mxu0 0
        %193 = vmatpush1.bf16.msra.mxu0 0
        %194 = vmatprep.subr.bf16.mxu0 0
        %195 = vmatpush1.bf16.msra.mxu0 0
        %196 = vmatprep.subr.bf16.mxu0 0
        %197 = vmatpush1.bf16.msra.mxu0 0
        %198 = vmatprep.subr.bf16.mxu0 0
        %199 = vmatpush1.bf16.msra.mxu0 0
        %200 = vmatprep.subr.bf16.mxu0 0
        %201 = vmatpush1.bf16.msra.mxu0 0
        %202 = vmatprep.subr.bf16.mxu0 0
        %203 = vmatpush1.bf16.msra.mxu0 0
        %204 = vmatprep.subr.bf16.mxu0 0
        %205 = vmatpush1.bf16.msra.mxu0 0
        %206 = vmatprep.subr.bf16.mxu0 0
        %207 = vmatpush1.bf16.msra.mxu0 0
        %208 = vmatprep.subr.bf16.mxu0 0
        %209 = vmatpush1.bf16.msra.mxu0 0
        %210 = vmatprep.subr.bf16.mxu0 0
        %211 = vmatpush1.bf16.msra.mxu0 0
        %212 = vmatprep.subr.bf16.mxu0 0
        %213 = vmatpush1.bf16.msra.mxu0 0
        %214 = vmatprep.subr.bf16.mxu0 0
        %215 = vmatpush1.bf16.msra.mxu0 0
        %216 = vmatprep.subr.bf16.mxu0 0
        %217 = vmatpush1.bf16.msra.mxu0 0
        %218 = vmatprep.subr.bf16.mxu0 0
        %219 = vmatpush1.bf16.msra.mxu0 0
        %220 = vmatprep.mubr.bf16.mxu0 0
        %221 = vmatmul.mubr.bf16.gmra.mrb[0].mxu0 %v186
        %v222 = vpop.f32.mrb[0].mxu0
        %v223 = vadd.f32 0.0, %v222
        %v224 = vpop.f32.mrb[0].mxu0
        %v225 = vpop.f32.mrb[0].mxu0
        %v226 = vpop.f32.mrb[0].mxu0
        %227 = vdwg.mxu0
        %v228 = vxor.u32 %v223, 2147483648
        %v229 = vmul.f32 %v228, 1.442695
        %v230 = vpow.pop %v229
        %v231 = vadd.f32 %v230, 1.0
        %v232 = vrcp.pop %v231
        %v233 = vmul.f32 1.0, %v232
        %vm234 = vcmask 130048
        %235 = vst.msk [vmem:[#allocation2] sm:$0xff] %vm234, %v233
        %v236 = vld [vmem:[%s2] sm:$0x1]
        %v237 = vlaneseq
        %v238 = vand.u32 %v237, 127
        %v239 = vld [vmem:[#allocation2] sm:$0xff]
        %v241 = vlaneseq
        %v242 = vshrl.u32 %v241, 7
        %v243 = vsub.s32 0, %v242
        %v244 = vrot.slane %v236, %v243
        %v246 = vadd.f32 %v239, %v244
        %vm247 = vcmp.ge.s32.totalorder %v238, 0
        %vm248 = vcmp.lt.s32.totalorder %v238, 4
        %vm249 = vmand %vm247, %vm248
        %v250 = vsel %vm249, 1, 0
        %vm251 = vcmp.eq.s32.totalorder %v250, 1
        %v252 = vsel %vm251, %v246, -1e+30
        %v253 = vsel %vm234, %v252, -inf
        %254 = vmax.xlane.f32.xlu0 %v253
        %v255 = vpop.xlane.xlu0 %254
        %vm256 = vcmp.eq.f32.partialorder %v252, %v255
        %v257 = vsel %vm256, -1e+30, %v252
        %v258 = vsel %vm234, %v257, -inf
        %259 = vmax.xlane.f32.xlu0 %v258
        %v260 = vpop.xlane.xlu0 %259
        %v261 = vadd.f32 %v255, %v260
        %v262 = vsel %vm251, %v261, 0.0
        %vm263 = vcmp.ge.s32.totalorder %v238, 4
        %vm264 = vcmp.lt.s32.totalorder %v238, 8
        %vm265 = vmand %vm263, %vm264
        %v266 = vsel %vm265, 1, 0
        %vm267 = vcmp.eq.s32.totalorder %v266, 1
        %v268 = vsel %vm267, %v246, -1e+30
        %v269 = vsel %vm234, %v268, -inf
        %270 = vmax.xlane.f32.xlu0 %v269
        %v271 = vpop.xlane.xlu0 %270
        %vm272 = vcmp.eq.f32.partialorder %v268, %v271
        %v273 = vsel %vm272, -1e+30, %v268
        %v274 = vsel %vm234, %v273, -inf
        %275 = vmax.xlane.f32.xlu0 %v274
        %v276 = vpop.xlane.xlu0 %275
        %v277 = vadd.f32 %v271, %v276
        %v278 = vsel %vm267, %v277, %v262
        %vm279 = vcmp.ge.s32.totalorder %v238, 8
        %vm280 = vcmp.lt.s32.totalorder %v238, 12
        %vm281 = vmand %vm279, %vm280
        %v282 = vsel %vm281, 1, 0
        %vm283 = vcmp.eq.s32.totalorder %v282, 1
        %v284 = vsel %vm283, %v246, -1e+30
        %v285 = vsel %vm234, %v284, -inf
        %286 = vmax.xlane.f32.xlu0 %v285
        %v287 = vpop.xlane.xlu0 %286
        %vm288 = vcmp.eq.f32.partialorder %v284, %v287
        %v289 = vsel %vm288, -1e+30, %v284
        %v290 = vsel %vm234, %v289, -inf
        %291 = vmax.xlane.f32.xlu0 %v290
        %v292 = vpop.xlane.xlu0 %291
        %v293 = vadd.f32 %v287, %v292
        %v294 = vsel %vm283, %v293, %v278
        %vm295 = vcmp.ge.s32.totalorder %v238, 12
        %vm296 = vcmp.lt.s32.totalorder %v238, 16
        %vm297 = vmand %vm295, %vm296
        %v298 = vsel %vm297, 1, 0
        %vm299 = vcmp.eq.s32.totalorder %v298, 1
        %v300 = vsel %vm299, %v246, -1e+30
        %v301 = vsel %vm234, %v300, -inf
        %302 = vmax.xlane.f32.xlu0 %v301
        %v303 = vpop.xlane.xlu0 %302
        %vm304 = vcmp.eq.f32.partialorder %v300, %v303
        %v305 = vsel %vm304, -1e+30, %v300
        %v306 = vsel %vm234, %v305, -inf
        %307 = vmax.xlane.f32.xlu0 %v306
        %v308 = vpop.xlane.xlu0 %307
        %v309 = vadd.f32 %v303, %v308
        %v310 = vsel %vm299, %v309, %v294
        %v311 = vsel %vm234, %v310, -inf
        %312 = vmax.xlane.f32.xlu0 %v311
        %v313 = vpop.xlane.xlu0 %312
        %vm314 = vcmp.eq.f32.partialorder %v310, %v313
        %v315 = vsel %vm314, %v246, 0.0
        %v316 = vsel %vm314, -1e+30, %v310
        %v317 = vsel %vm234, %v316, -inf
        %318 = vmax.xlane.f32.xlu0 %v317
        %v319 = vpop.xlane.xlu0 %318
        %vm320 = vcmp.eq.f32.partialorder %v316, %v319
        %v321 = vsel %vm320, %v246, %v315
        %v322 = vsel %vm234, %v321, -inf
        %323 = vmax.xlane.f32.xlu0 %v322
        %v324 = vpop.xlane.xlu0 %323
        %vm325 = vcmp.eq.f32.partialorder %v321, %v324
        %v326 = vsel %vm325, %v238, 16
        %v327 = vsel %vm234, %v326, 2147483647
        %v328 = vand.u32 %v327, 65535
        %v329 = vshra.s32 %v327, 16
        %v330 = vcvt.s32.f32 %v328
        %v331 = vcvt.s32.f32 %v329
        %332 = vmin.xlane.f32.xlu0 %v331
        %v333 = vpop.xlane.xlu0 %332
        %vm334 = vcmp.eq.f32.partialorder %v331, %v333
        %v335 = vsel %vm334, %v330, inf
        %336 = vmin.xlane.f32.xlu0 %v335
        %v337 = vpop.xlane.xlu0 %336
        %v338 = vcvt.f32.s32 %v337
        %v339 = vcvt.f32.s32 %v333
        %v340 = vshll.u32 %v339, 16
        %v341 = vadd.s32 %v340, %v338
        %vm342 = vcmp.eq.s32.totalorder %v238, %v341
        %v343 = vsel %vm342, %v239, 0.0
        %v344 = vsel %vm234, %v343, 0.0
        %345 = vadd.xlane.f32.xlu0 %v344
        %v346 = vpop.xlane.xlu0 %345
        %v347 = vcvt.s32.f32 %v341
        %v348 = vsel %vm342, -1e+30, %v321
        %v349 = vsel %vm234, %v348, -inf
        %350 = vmax.xlane.f32.xlu0 %v349
        %v351 = vpop.xlane.xlu0 %350
        %vm352 = vcmp.eq.f32.partialorder %v348, %v351
        %v353 = vsel %vm352, %v238, 16
        %v354 = vsel %vm234, %v353, 2147483647
        %v355 = vand.u32 %v354, 65535
        %v356 = vshra.s32 %v354, 16
        %v357 = vcvt.s32.f32 %v355
        %v358 = vcvt.s32.f32 %v356
        %359 = vmin.xlane.f32.xlu0 %v358
        %v360 = vpop.xlane.xlu0 %359
        %vm361 = vcmp.eq.f32.partialorder %v358, %v360
        %v362 = vsel %vm361, %v357, inf
        %363 = vmin.xlane.f32.xlu0 %v362
        %v364 = vpop.xlane.xlu0 %363
        %v365 = vcvt.f32.s32 %v364
        %v366 = vcvt.f32.s32 %v360
        %v367 = vshll.u32 %v366, 16
        %v368 = vadd.s32 %v367, %v365
        %vm369 = vcmp.eq.s32.totalorder %v238, %v368
        %v370 = vsel %vm369, %v239, 0.0
        %v371 = vsel %vm234, %v370, 0.0
        %372 = vadd.xlane.f32.xlu0 %v371
        %v373 = vpop.xlane.xlu0 %372
        %v374 = vcvt.s32.f32 %v368
        %v375 = vsel %vm369, -1e+30, %v348
        %v376 = vsel %vm234, %v375, -inf
        %377 = vmax.xlane.f32.xlu0 %v376
        %v378 = vpop.xlane.xlu0 %377
        %vm379 = vcmp.eq.f32.partialorder %v375, %v378
        %v380 = vsel %vm379, %v238, 16
        %v381 = vsel %vm234, %v380, 2147483647
        %v382 = vand.u32 %v381, 65535
        %v383 = vshra.s32 %v381, 16
        %v384 = vcvt.s32.f32 %v382
        %v385 = vcvt.s32.f32 %v383
        %386 = vmin.xlane.f32.xlu0 %v385
        %v387 = vpop.xlane.xlu0 %386
        %vm388 = vcmp.eq.f32.partialorder %v385, %v387
        %v389 = vsel %vm388, %v384, inf
        %390 = vmin.xlane.f32.xlu0 %v389
        %v391 = vpop.xlane.xlu0 %390
        %v392 = vcvt.f32.s32 %v391
        %v393 = vcvt.f32.s32 %v387
        %v394 = vshll.u32 %v393, 16
        %v395 = vadd.s32 %v394, %v392
        %vm396 = vcmp.eq.s32.totalorder %v238, %v395
        %v397 = vsel %vm396, %v239, 0.0
        %v398 = vsel %vm234, %v397, 0.0
        %399 = vadd.xlane.f32.xlu0 %v398
        %v400 = vpop.xlane.xlu0 %399
        %v401 = vcvt.s32.f32 %v395
        %v402 = vsel %vm396, -1e+30, %v375
        %v403 = vsel %vm234, %v402, -inf
        %404 = vmax.xlane.f32.xlu0 %v403
        %v405 = vpop.xlane.xlu0 %404
        %vm406 = vcmp.eq.f32.partialorder %v402, %v405
        %v407 = vsel %vm406, %v238, 16
        %v408 = vsel %vm234, %v407, 2147483647
        %v409 = vand.u32 %v408, 65535
        %v410 = vshra.s32 %v408, 16
        %v411 = vcvt.s32.f32 %v409
        %v412 = vcvt.s32.f32 %v410
        %413 = vmin.xlane.f32.xlu0 %v412
        %v414 = vpop.xlane.xlu0 %413
        %vm415 = vcmp.eq.f32.partialorder %v412, %v414
        %v416 = vsel %vm415, %v411, inf
        %417 = vmin.xlane.f32.xlu0 %v416
        %v418 = vpop.xlane.xlu0 %417
        %v419 = vcvt.f32.s32 %v418
        %v420 = vcvt.f32.s32 %v414
        %v421 = vshll.u32 %v420, 16
        %v422 = vadd.s32 %v421, %v419
        %vm423 = vcmp.eq.s32.totalorder %v238, %v422
        %v424 = vsel %vm423, %v239, 0.0
        %v425 = vsel %vm234, %v424, 0.0
        %426 = vadd.xlane.f32.xlu0 %v425
        %v427 = vpop.xlane.xlu0 %426
        %v428 = vcvt.s32.f32 %v422
        %v429 = vmul.f32 %v346, 2.5
        %v430 = vmul.f32 %v373, 2.5
        %v431 = vmul.f32 %v400, 2.5
        %v432 = vmul.f32 %v427, 2.5
        %vm433 = vcmp.eq.s32.totalorder %v238, 0
        %v434 = vsel %vm433, 1, 0
        %vm435 = vcmp.eq.s32.totalorder %v434, 1
        %v436 = vsel %vm435, %v429, 0.0
        %vm437 = vcmp.eq.s32.totalorder %v238, 64
        %v438 = vsel %vm437, 1, 0
        %vm439 = vcmp.eq.s32.totalorder %v438, 1
        %v440 = vsel %vm439, %v347, %v436
        %vm441 = vcmp.eq.s32.totalorder %v238, 1
        %v442 = vsel %vm441, 1, 0
        %vm443 = vcmp.eq.s32.totalorder %v442, 1
        %v444 = vsel %vm443, %v430, %v440
        %vm445 = vcmp.eq.s32.totalorder %v238, 65
        %v446 = vsel %vm445, 1, 0
        %vm447 = vcmp.eq.s32.totalorder %v446, 1
        %v448 = vsel %vm447, %v374, %v444
        %vm449 = vcmp.eq.s32.totalorder %v238, 2
        %v450 = vsel %vm449, 1, 0
        %vm451 = vcmp.eq.s32.totalorder %v450, 1
        %v452 = vsel %vm451, %v431, %v448
        %vm453 = vcmp.eq.s32.totalorder %v238, 66
        %v454 = vsel %vm453, 1, 0
        %vm455 = vcmp.eq.s32.totalorder %v454, 1
        %v456 = vsel %vm455, %v401, %v452
        %vm457 = vcmp.eq.s32.totalorder %v238, 3
        %v458 = vsel %vm457, 1, 0
        %vm459 = vcmp.eq.s32.totalorder %v458, 1
        %v460 = vsel %vm459, %v432, %v456
        %vm461 = vcmp.eq.s32.totalorder %v238, 67
        %v462 = vsel %vm461, 1, 0
        %vm463 = vcmp.eq.s32.totalorder %v462, 1
        %v464 = vsel %vm463, %v428, %v460
        %465 = vst [vmem:[%s161] sm:$0xff] %v464
        %s466 = sand.u32 %s93, 1
        %s467 = scalar_lea.sflag [#allocation4], %s466
        %s468 = sand.u32 %s93, 1
        %s469 = smul.addr %s468, 8
        %s470 = scalar_lea.vmem [#allocation3], %s469
        // Predicated region
        $region33: #{tpu_custom_call.1} parent=31 // pred_check
          %p471 = pneg %p103
        $region34: #{tpu_custom_call.1} parent=31 // pred_check_branch
          %473 = sbr.rel (%p471) target = $region36
        $region35: #{tpu_custom_call.1} parent=31 // pred_region
          %s475 = ssub.s32 128, 128
          %476 = vsyncadd %s467, %s475
          %s477 = smul.addr %s17, 128
          %s478 = scalar_lea.hbm %s3, %s477
          %s480 = sshll.u32 %s470, 4
          %s481 = int_to_ptr.vmem [resolvable:$true] %s480
          %483 = dma.vmem_to_hbm [thread:$0]  %s481, 128, %s478, %s467
        $region36: #{tpu_custom_call.1} parent=31 // pred_fallthru
          _
      $region32: #{tpu_custom_call.1} parent=5 // pred_fallthru
        _
      %p484 = scmp.le.s32.totalorder 2, %s12
      // Predicated region
      $region37: #{tpu_custom_call.1} parent=5 // pred_check
        %p485 = pneg %p484
      $region38: #{tpu_custom_call.1} parent=5 // pred_check_branch
        %487 = sbr.rel (%p485) target = $region40
      $region39: #{tpu_custom_call.1} parent=5 // pred_region
        %s488 = ssub.s32 %s12, 2
        // Predicated region
        $region41: #{tpu_custom_call.1} parent=39 // pred_check
          %p489 = pneg %p109
        $region42: #{tpu_custom_call.1} parent=39 // pred_check_branch
          %491 = sbr.rel (%p489) target = $region44
        $region43: #{tpu_custom_call.1} parent=39 // pred_region
          %s492 = sand.u32 %s94, 1
          %s493 = scalar_lea.sflag [#allocation4], %s492
          %s494 = sand.u32 %s94, 1
          %s495 = smul.addr %s494, 8
          %s496 = scalar_lea.vmem [#allocation3], %s495
          %497 = dma.done %s493, 128
        $region44: #{tpu_custom_call.1} parent=39 // pred_fallthru
          _
      $region40: #{tpu_custom_call.1} parent=5 // pred_fallthru
        _
    $region6: #{tpu_custom_call.1} parent=1 // loop_footer
      %s16 = sadd.s32 1, %s12
    $region7: #{tpu_custom_call.1} parent=1 // loop_footer_branch
      %11 = sbr.rel target = $region3
    $region8: #{tpu_custom_call.1} parent=1 // loop_exit
      _
    %498 = vsyncpa [#allocation4], 1
    %s499 = scalar_lea.sflag [#allocation4], 1
    %500 = vsyncpa %s499, 1

</llo_original>
